<compile_context>
chip_gen: v7x
topology: tpu7x:2x2x1
jax: 0.10.0
libtpu: 0.0.40
codegen_flags: <defaults>
</compile_context>

<pallas_src>
import functools
import math

import jax
import jax.numpy as jnp
from jax.experimental import pallas as pl
from jax.experimental.pallas import tpu as pltpu


def attention_kernel(x_ref, cos_ref, sin_ref, mask_ref,
                     wq_ref, wk_ref, wv_ref, wo_ref, o_ref, ctx_ref,
                     *, n_heads, dh, half, tq, compute_dtype, approx_recip):
    """grid = (B, L // tq). x is the full (L, D) sequence of one batch element
    (constant over the query-tile axis); mask is the (tq, L) slice for this
    query tile; cos/sin and the four weights are VMEM-resident, single-buffered."""
    qi = pl.program_id(1)
    qs = pl.multiple_of(qi * tq, tq)

    x_full = x_ref[0]                                # (L, D)  compute_dtype
    x_q = x_ref[0, pl.ds(qs, tq), :]                 # (tq, D) query-tile rows

    # Full-width projections on the MXU (bf16 operands, f32 accumulation).
    # Q only for this query tile; K/V for the whole sequence (recomputed per
    # q tile -- see TODO at top of file).
    q = jnp.dot(x_q, wq_ref[...], preferred_element_type=jnp.float32)     # (tq, D), pre-scaled by 1/sqrt(dh)
    k = jnp.dot(x_full, wk_ref[...], preferred_element_type=jnp.float32)  # (L, D)
    v = jnp.dot(x_full, wv_ref[...], preferred_element_type=jnp.float32)  # (L, D)

    cos_k = cos_ref[...]                             # (L, dh)
    sin_k = sin_ref[...]                             # (L, dh)
    cos_q = cos_ref[pl.ds(qs, tq), :]                # (tq, dh)
    sin_q = sin_ref[pl.ds(qs, tq), :]                # (tq, dh)
    mask = mask_ref[...]                             # (tq, L) f32 additive

    # De-interleaved ([evens | odds]) per-head rotary.  Shift is exactly half
    # the axis, so roll direction is irrelevant.  pltpu.roll issues on the
    # otherwise-idle XLU slot when the lane extent (dh) is 128-aligned.
    roll = pltpu.roll if dh % 128 == 0 else jnp.roll

    def rope(t, c, s):
        return t * c + roll(t, half, 1) * s

    for h in range(n_heads):                         # static unroll; n_heads small
        lo = h * dh
        q_h = rope(q[:, lo:lo + dh], cos_q, sin_q)   # (tq, dh) f32
        k_h = rope(k[:, lo:lo + dh], cos_k, sin_k)   # (L,  dh) f32
        v_h = v[:, lo:lo + dh]                       # (L,  dh) f32

        # Scores (scale already folded into W_q), additive mask, softmax with
        # deferred normalization.
        s = jax.lax.dot_general(
            q_h.astype(compute_dtype), k_h.astype(compute_dtype),
            (((1,), (1,)), ((), ())),
            preferred_element_type=jnp.float32)      # (tq, L)
        s = s + mask
        s = s - jnp.max(s, axis=-1, keepdims=True)
        p = jnp.exp(s)
        denom = jnp.maximum(jnp.sum(p, axis=-1, keepdims=True), 1e-30)   # (tq, 1)
        ctx = jnp.dot(p.astype(compute_dtype), v_h.astype(compute_dtype),
                      preferred_element_type=jnp.float32)                # (tq, dh)
        # Write this head's context into the VMEM scratch slab (no concat).
        ctx_ref[:, lo:lo + dh] = ctx * pl.reciprocal(denom, approx=approx_recip)

    # Output projection at full width from the scratch slab.
    o_ref[0] = jnp.dot(ctx_ref[...].astype(compute_dtype), wo_ref[...],
                       preferred_element_type=jnp.float32)               # (tq, D)


def prepare_attention_weights(wq, wk, wv, wo, n_heads,
                              compute_dtype=jnp.bfloat16):
    """One-time weight preprocessing (hoist out of the per-call path).
    nn.Linear weights are (out, in): transpose so the kernel computes x @ W.
    Fold the 1/sqrt(dh) score scale into W_q (exact: rotary is linear) and
    de-interleave each head's output columns of W_q/W_k to [evens | odds]."""
    D = wq.shape[0]
    dh = D // n_heads
    scale = math.sqrt(dh)
    local = jnp.concatenate([jnp.arange(0, dh, 2), jnp.arange(1, dh, 2)])
    perm = (jnp.arange(n_heads)[:, None] * dh + local[None, :]).reshape(-1)
    wq_t = (wq.T[:, perm] / scale).astype(compute_dtype)
    wk_t = wk.T[:, perm].astype(compute_dtype)
    wv_t = wv.T.astype(compute_dtype)
    wo_t = wo.T.astype(compute_dtype)
    return wq_t, wk_t, wv_t, wo_t


def prepare_rotary(cos, sin):
    """cos/sin: (L, dh//2) real/imag parts of `freqs` -> de-interleaved (L, dh)."""
    cos2 = jnp.concatenate([cos, cos], axis=-1).astype(jnp.float32)
    sin2 = jnp.concatenate([-sin, sin], axis=-1).astype(jnp.float32)
    return cos2, sin2


def attention_pallas(x, wq_t, wk_t, wv_t, wo_t, cos2, sin2, mask, n_heads,
                     *, tq=None, compute_dtype=jnp.bfloat16, approx_recip=True):
    """x: (B, L, D) f32.  wq_t/wk_t/wv_t/wo_t: outputs of prepare_attention_weights.
    cos2/sin2: outputs of prepare_rotary ((L, dh)).  mask: (L, L) additive or None."""
    B, L, D = x.shape
    assert D % n_heads == 0, "d_model must be divisible by n_heads"
    dh = D // n_heads
    assert dh % 2 == 0, "head dim must be even for rotary embeddings"
    half = dh // 2

    if tq is None:
        tq = L if L <= 128 else 128
    assert L % tq == 0 and tq % 8 == 0, "query tile must divide L and be a multiple of 8"
    n_q = L // tq

    if mask is None:
        mask = jnp.zeros((L, L), jnp.float32)
    mask_f = mask.astype(jnp.float32)
    x_c = x.astype(compute_dtype)

    kernel = functools.partial(
        attention_kernel, n_heads=n_heads, dh=dh, half=half, tq=tq,
        compute_dtype=compute_dtype, approx_recip=approx_recip)

    # Constant-index inputs: single-buffered (block index never changes, so a
    # second buffer would only double VMEM residency).
    def resident(shape):
        return pl.BlockSpec(shape, lambda b, qi: (0,) * len(shape),
                            pipeline_mode=pl.Buffered(1))

    # Explicit scoped-VMEM limit sized from the resident set + temporaries.
    itemsize = jnp.dtype(compute_dtype).itemsize
    est = (4 * D * D * itemsize          # resident weights (single-buffered)
           + 2 * L * dh * 4              # resident cos/sin (f32)
           + 2 * 2 * tq * L * 4          # mask tiles (double-buffered)
           + 2 * L * D * itemsize        # x blocks (double-buffered)
           + 2 * tq * D * 4              # out blocks (double-buffered)
           + tq * D * 4                  # ctx scratch
           + (tq + 2 * L) * D * 4        # q/k/v f32 temporaries
           + 4 * tq * L * 4)             # score/prob temporaries
    vmem_limit = int(min(max(2 * est, 32 * 1024 * 1024), 64 * 1024 * 1024))

    grid_spec = pltpu.PrefetchScalarGridSpec(
        num_scalar_prefetch=0,
        grid=(B, n_q),
        in_specs=[
            pl.BlockSpec((1, L, D), lambda b, qi: (b, 0, 0)),   # x (full seq per batch)
            resident((L, dh)),                                  # cos2
            resident((L, dh)),                                  # sin2
            pl.BlockSpec((tq, L), lambda b, qi: (qi, 0)),       # mask (streamed per q tile)
            resident((D, D)),                                   # W_q^T (scaled + permuted)
            resident((D, D)),                                   # W_k^T (permuted)
            resident((D, D)),                                   # W_v^T
            resident((D, D)),                                   # W_o^T
        ],
        out_specs=pl.BlockSpec((1, tq, D), lambda b, qi: (b, qi, 0)),
        scratch_shapes=[pltpu.VMEM((tq, D), jnp.float32)],      # per-head ctx slab
    )

    return pl.pallas_call(
        kernel,
        out_shape=jax.ShapeDtypeStruct((B, L, D), jnp.float32),
        grid_spec=grid_spec,
        compiler_params=pltpu.CompilerParams(
            dimension_semantics=("parallel", "parallel"),
            vmem_limit_bytes=vmem_limit),
    )(x_c, cos2, sin2, mask_f, wq_t, wk_t, wv_t, wo_t)


def attention_reference(x, wq, wk, wv, wo, cos, sin, mask, n_heads):
    """Pure-JAX f32 mirror of the PyTorch forward (interleaved rotary)."""
    B, L, D = x.shape
    dh = D // n_heads

    def split(t):
        return t.reshape(B, L, n_heads, dh).transpose(0, 2, 1, 3)

    q = split(x @ wq.T)
    k = split(x @ wk.T)
    v = split(x @ wv.T)

    def rope(t):
        tr = t.reshape(B, n_heads, L, dh // 2, 2)
        te, to = tr[..., 0], tr[..., 1]
        oe = te * cos - to * sin
        oo = te * sin + to * cos
        return jnp.stack([oe, oo], axis=-1).reshape(B, n_heads, L, dh)

    q = rope(q)
    k = rope(k)
    s = q @ k.transpose(0, 1, 3, 2) / math.sqrt(dh) + mask[None, None]
    p = jax.nn.softmax(s, axis=-1)
    ctx = (p @ v).transpose(0, 2, 1, 3).reshape(B, L, D)
    return ctx @ wo.T


if __name__ == "__main__":
    B, L, d_model, n_heads = 2, 128, 256, 2
    dh = d_model // n_heads
    tq = 64                                           # 2 query tiles per batch

    key = jax.random.PRNGKey(0)
    kx, kq, kk, kv, ko = jax.random.split(key, 5)

    x = jax.random.normal(kx, (B, L, d_model), dtype=jnp.float32)
    # Deterministic "nn.Linear(d_model, d_model, bias=False)" weights, (out, in).
    wq = jax.random.normal(kq, (d_model, d_model), dtype=jnp.float32) * 0.05
    wk = jax.random.normal(kk, (d_model, d_model), dtype=jnp.float32) * 0.05
    wv = jax.random.normal(kv, (d_model, d_model), dtype=jnp.float32) * 0.05
    wo = jax.random.normal(ko, (d_model, d_model), dtype=jnp.float32) * 0.05

    # freqs: complex (L, dh/2) rotary frequencies -> pass cos/sin parts.
    theta = 10000.0 ** (-jnp.arange(0, dh, 2, dtype=jnp.float32) / dh)   # (dh/2,)
    ang = jnp.arange(L, dtype=jnp.float32)[:, None] * theta[None, :]     # (L, dh/2)
    cos, sin = jnp.cos(ang), jnp.sin(ang)

    # Additive causal attention mask (L, L).
    mask = jnp.where(jnp.tril(jnp.ones((L, L), dtype=bool)), 0.0, -1e9).astype(jnp.float32)

    # One-time preprocessing (hoisted out of the per-call path).
    wq_t, wk_t, wv_t, wo_t = prepare_attention_weights(wq, wk, wv, wo, n_heads)
    cos2, sin2 = prepare_rotary(cos, sin)

    out = attention_pallas(x, wq_t, wk_t, wv_t, wo_t, cos2, sin2, mask, n_heads, tq=tq)
    out = jax.block_until_ready(out)

    ref = attention_reference(x, wq, wk, wv, wo, cos, sin, mask, n_heads)
    rel_err = float(jnp.max(jnp.abs(out - ref)) / (jnp.max(jnp.abs(ref)) + 1e-6))
    assert rel_err < 5e-2, f"relative error too large: {rel_err}"
    print("KERNEL_OK")
</pallas_src>

<mosaic_0001>
module attributes {stable_mosaic.version = 11 : i64} {
  func.func @attention_kernel(%arg0: i32, %arg1: i32, %arg2: memref<1x128x256xbf16, #tpu.memory_space<vmem>>, %arg3: memref<128x128xf32, #tpu.memory_space<vmem>>, %arg4: memref<128x128xf32, #tpu.memory_space<vmem>>, %arg5: memref<64x128xf32, #tpu.memory_space<vmem>>, %arg6: memref<256x256xbf16, #tpu.memory_space<vmem>>, %arg7: memref<256x256xbf16, #tpu.memory_space<vmem>>, %arg8: memref<256x256xbf16, #tpu.memory_space<vmem>>, %arg9: memref<256x256xbf16, #tpu.memory_space<vmem>>, %arg10: memref<1x64x256xf32, #tpu.memory_space<vmem>>, %arg11: memref<64x256xf32, #tpu.memory_space<vmem>>) attributes {dimension_semantics = [#tpu.dimension_semantics<parallel>, #tpu.dimension_semantics<parallel>], iteration_bounds = array<i64: 2, 2>, scalar_prefetch = 0 : i64, scratch_operands = 1 : i64, tpu.core_type = #tpu.core_type<tc>, window_params = [{transform_indices = @transform_0, window_bounds = array<i64: 1, 128, 256>}, {pipeline_mode = #tpu.pipeline_mode<synchronous>, transform_indices = @transform_1, window_bounds = array<i64: 128, 128>}, {pipeline_mode = #tpu.pipeline_mode<synchronous>, transform_indices = @transform_2, window_bounds = array<i64: 128, 128>}, {transform_indices = @transform_3, window_bounds = array<i64: 64, 128>}, {pipeline_mode = #tpu.pipeline_mode<synchronous>, transform_indices = @transform_4, window_bounds = array<i64: 256, 256>}, {pipeline_mode = #tpu.pipeline_mode<synchronous>, transform_indices = @transform_5, window_bounds = array<i64: 256, 256>}, {pipeline_mode = #tpu.pipeline_mode<synchronous>, transform_indices = @transform_6, window_bounds = array<i64: 256, 256>}, {pipeline_mode = #tpu.pipeline_mode<synchronous>, transform_indices = @transform_7, window_bounds = array<i64: 256, 256>}, {transform_indices = @transform_8, window_bounds = array<i64: 1, 64, 256>}]} {
    %c64_i32 = arith.constant 64 : i32
    %0 = arith.muli %arg1, %c64_i32 : i32
    %1 = tpu.assume_multiple %0, 64 : i32
    %c0 = arith.constant 0 : index
    %c0_0 = arith.constant 0 : index
    %c0_1 = arith.constant 0 : index
    %2 = vector.load %arg2[%c0, %c0_0, %c0_1] : memref<1x128x256xbf16, #tpu.memory_space<vmem>>, vector<1x128x256xbf16>
    %3 = vector.shape_cast %2 : vector<1x128x256xbf16> to vector<128x256xbf16>
    %c0_2 = arith.constant 0 : index
    %4 = arith.index_cast %1 : i32 to index
    %c0_3 = arith.constant 0 : index
    %5 = vector.load %arg2[%c0_2, %4, %c0_3] : memref<1x128x256xbf16, #tpu.memory_space<vmem>>, vector<1x64x256xbf16>
    %6 = vector.shape_cast %5 : vector<1x64x256xbf16> to vector<64x256xbf16>
    %c0_4 = arith.constant 0 : index
    %c0_5 = arith.constant 0 : index
    %7 = vector.load %arg6[%c0_4, %c0_5] : memref<256x256xbf16, #tpu.memory_space<vmem>>, vector<256x256xbf16>
    %cst = arith.constant dense<0.000000e+00> : vector<64x256xf32>
    %8 = tpu.matmul %6, %7, %cst {dimension_numbers = #tpu.dot_dimension_numbers<[1], [0], [0], [1], [0, 0, 1, 1], [], []>} : vector<64x256xbf16>, vector<256x256xbf16>, vector<64x256xf32> -> vector<64x256xf32>
    %c0_6 = arith.constant 0 : index
    %c0_7 = arith.constant 0 : index
    %9 = vector.load %arg7[%c0_6, %c0_7] : memref<256x256xbf16, #tpu.memory_space<vmem>>, vector<256x256xbf16>
    %cst_8 = arith.constant dense<0.000000e+00> : vector<128x256xf32>
    %10 = tpu.matmul %3, %9, %cst_8 {dimension_numbers = #tpu.dot_dimension_numbers<[1], [0], [0], [1], [0, 0, 1, 1], [], []>} : vector<128x256xbf16>, vector<256x256xbf16>, vector<128x256xf32> -> vector<128x256xf32>
    %c0_9 = arith.constant 0 : index
    %c0_10 = arith.constant 0 : index
    %11 = vector.load %arg8[%c0_9, %c0_10] : memref<256x256xbf16, #tpu.memory_space<vmem>>, vector<256x256xbf16>
    %cst_11 = arith.constant dense<0.000000e+00> : vector<128x256xf32>
    %12 = tpu.matmul %3, %11, %cst_11 {dimension_numbers = #tpu.dot_dimension_numbers<[1], [0], [0], [1], [0, 0, 1, 1], [], []>} : vector<128x256xbf16>, vector<256x256xbf16>, vector<128x256xf32> -> vector<128x256xf32>
    %c0_12 = arith.constant 0 : index
    %c0_13 = arith.constant 0 : index
    %13 = vector.load %arg3[%c0_12, %c0_13] : memref<128x128xf32, #tpu.memory_space<vmem>>, vector<128x128xf32>
    %c0_14 = arith.constant 0 : index
    %c0_15 = arith.constant 0 : index
    %14 = vector.load %arg4[%c0_14, %c0_15] : memref<128x128xf32, #tpu.memory_space<vmem>>, vector<128x128xf32>
    %15 = arith.index_cast %1 : i32 to index
    %c0_16 = arith.constant 0 : index
    %16 = vector.load %arg3[%15, %c0_16] : memref<128x128xf32, #tpu.memory_space<vmem>>, vector<64x128xf32>
    %17 = arith.index_cast %1 : i32 to index
    %c0_17 = arith.constant 0 : index
    %18 = vector.load %arg4[%17, %c0_17] : memref<128x128xf32, #tpu.memory_space<vmem>>, vector<64x128xf32>
    %c0_18 = arith.constant 0 : index
    %c0_19 = arith.constant 0 : index
    %19 = vector.load %arg5[%c0_18, %c0_19] : memref<64x128xf32, #tpu.memory_space<vmem>>, vector<64x128xf32>
    %20 = vector.extract_strided_slice %8 {offsets = [0, 0], sizes = [64, 128], strides = [1, 1]} : vector<64x256xf32> to vector<64x128xf32>
    %21 = arith.mulf %20, %16 : vector<64x128xf32>
    %c64_i32_20 = arith.constant 64 : i32
    %22 = tpu.dynamic_rotate %20 by %c64_i32_20 dim 1 : vector<64x128xf32>, i32 -> vector<64x128xf32>
    %23 = arith.mulf %22, %18 : vector<64x128xf32>
    %24 = arith.addf %21, %23 : vector<64x128xf32>
    %25 = vector.extract_strided_slice %10 {offsets = [0, 0], sizes = [128, 128], strides = [1, 1]} : vector<128x256xf32> to vector<128x128xf32>
    %26 = arith.mulf %25, %13 : vector<128x128xf32>
    %c64_i32_21 = arith.constant 64 : i32
    %27 = tpu.dynamic_rotate %25 by %c64_i32_21 dim 1 : vector<128x128xf32>, i32 -> vector<128x128xf32>
    %28 = arith.mulf %27, %14 : vector<128x128xf32>
    %29 = arith.addf %26, %28 : vector<128x128xf32>
    %30 = vector.extract_strided_slice %12 {offsets = [0, 0], sizes = [128, 128], strides = [1, 1]} : vector<128x256xf32> to vector<128x128xf32>
    %31 = arith.truncf %24 : vector<64x128xf32> to vector<64x128xbf16>
    %32 = arith.truncf %29 : vector<128x128xf32> to vector<128x128xbf16>
    %cst_22 = arith.constant dense<0.000000e+00> : vector<64x128xf32>
    %33 = tpu.matmul %31, %32, %cst_22 {dimension_numbers = #tpu.dot_dimension_numbers<[1], [1], [0], [0], [0, 0, 1, 0], [], []>} : vector<64x128xbf16>, vector<128x128xbf16>, vector<64x128xf32> -> vector<64x128xf32>
    %34 = arith.addf %33, %19 : vector<64x128xf32>
    %cst_23 = arith.constant dense<0xFF800000> : vector<64xf32>
    %35 = vector.multi_reduction <maximumf>, %34, %cst_23 [1] : vector<64x128xf32> to vector<64xf32>
    %36 = vector.shape_cast %35 : vector<64xf32> to vector<64x1xf32>
    %37 = vector.broadcast %36 : vector<64x1xf32> to vector<64x128xf32>
    %38 = arith.subf %34, %37 : vector<64x128xf32>
    %39 = math.exp %38 : vector<64x128xf32>
    %cst_24 = arith.constant dense<0.000000e+00> : vector<64xf32>
    %40 = vector.multi_reduction <add>, %39, %cst_24 [1] : vector<64x128xf32> to vector<64xf32>
    %41 = vector.shape_cast %40 : vector<64xf32> to vector<64x1xf32>
    %cst_25 = arith.constant 1.000000e-30 : f32
    %42 = vector.broadcast %cst_25 : f32 to vector<64x1xf32>
    %43 = arith.maximumf %41, %42 : vector<64x1xf32>
    %44 = arith.truncf %39 : vector<64x128xf32> to vector<64x128xbf16>
    %45 = arith.truncf %30 : vector<128x128xf32> to vector<128x128xbf16>
    %cst_26 = arith.constant dense<0.000000e+00> : vector<64x128xf32>
    %46 = tpu.matmul %44, %45, %cst_26 {dimension_numbers = #tpu.dot_dimension_numbers<[1], [0], [0], [1], [0, 0, 1, 1], [], []>} : vector<64x128xbf16>, vector<128x128xbf16>, vector<64x128xf32> -> vector<64x128xf32>
    %47 = tpu.reciprocal %43 {approx = true} : vector<64x1xf32> -> vector<64x1xf32>
    %48 = vector.broadcast %47 : vector<64x1xf32> to vector<64x128xf32>
    %49 = arith.mulf %46, %48 : vector<64x128xf32>
    %c0_27 = arith.constant 0 : index
    %c0_28 = arith.constant 0 : index
    %50 = vector.load %arg11[%c0_27, %c0_28] : memref<64x256xf32, #tpu.memory_space<vmem>>, vector<64x128xf32>
    tpu.vector_store %arg11[%c0_27, %c0_28], %49 {strides = array<i32>} : memref<64x256xf32, #tpu.memory_space<vmem>>, vector<64x128xf32>,
    %51 = vector.extract_strided_slice %8 {offsets = [0, 128], sizes = [64, 128], strides = [1, 1]} : vector<64x256xf32> to vector<64x128xf32>
    %52 = arith.mulf %51, %16 : vector<64x128xf32>
    %c64_i32_29 = arith.constant 64 : i32
    %53 = tpu.dynamic_rotate %51 by %c64_i32_29 dim 1 : vector<64x128xf32>, i32 -> vector<64x128xf32>
    %54 = arith.mulf %53, %18 : vector<64x128xf32>
    %55 = arith.addf %52, %54 : vector<64x128xf32>
    %56 = vector.extract_strided_slice %10 {offsets = [0, 128], sizes = [128, 128], strides = [1, 1]} : vector<128x256xf32> to vector<128x128xf32>
    %57 = arith.mulf %56, %13 : vector<128x128xf32>
    %c64_i32_30 = arith.constant 64 : i32
    %58 = tpu.dynamic_rotate %56 by %c64_i32_30 dim 1 : vector<128x128xf32>, i32 -> vector<128x128xf32>
    %59 = arith.mulf %58, %14 : vector<128x128xf32>
    %60 = arith.addf %57, %59 : vector<128x128xf32>
    %61 = vector.extract_strided_slice %12 {offsets = [0, 128], sizes = [128, 128], strides = [1, 1]} : vector<128x256xf32> to vector<128x128xf32>
    %62 = arith.truncf %55 : vector<64x128xf32> to vector<64x128xbf16>
    %63 = arith.truncf %60 : vector<128x128xf32> to vector<128x128xbf16>
    %cst_31 = arith.constant dense<0.000000e+00> : vector<64x128xf32>
    %64 = tpu.matmul %62, %63, %cst_31 {dimension_numbers = #tpu.dot_dimension_numbers<[1], [1], [0], [0], [0, 0, 1, 0], [], []>} : vector<64x128xbf16>, vector<128x128xbf16>, vector<64x128xf32> -> vector<64x128xf32>
    %65 = arith.addf %64, %19 : vector<64x128xf32>
    %cst_32 = arith.constant dense<0xFF800000> : vector<64xf32>
    %66 = vector.multi_reduction <maximumf>, %65, %cst_32 [1] : vector<64x128xf32> to vector<64xf32>
    %67 = vector.shape_cast %66 : vector<64xf32> to vector<64x1xf32>
    %68 = vector.broadcast %67 : vector<64x1xf32> to vector<64x128xf32>
    %69 = arith.subf %65, %68 : vector<64x128xf32>
    %70 = math.exp %69 : vector<64x128xf32>
    %cst_33 = arith.constant dense<0.000000e+00> : vector<64xf32>
    %71 = vector.multi_reduction <add>, %70, %cst_33 [1] : vector<64x128xf32> to vector<64xf32>
    %72 = vector.shape_cast %71 : vector<64xf32> to vector<64x1xf32>
    %cst_34 = arith.constant 1.000000e-30 : f32
    %73 = vector.broadcast %cst_34 : f32 to vector<64x1xf32>
    %74 = arith.maximumf %72, %73 : vector<64x1xf32>
    %75 = arith.truncf %70 : vector<64x128xf32> to vector<64x128xbf16>
    %76 = arith.truncf %61 : vector<128x128xf32> to vector<128x128xbf16>
    %cst_35 = arith.constant dense<0.000000e+00> : vector<64x128xf32>
    %77 = tpu.matmul %75, %76, %cst_35 {dimension_numbers = #tpu.dot_dimension_numbers<[1], [0], [0], [1], [0, 0, 1, 1], [], []>} : vector<64x128xbf16>, vector<128x128xbf16>, vector<64x128xf32> -> vector<64x128xf32>
    %78 = tpu.reciprocal %74 {approx = true} : vector<64x1xf32> -> vector<64x1xf32>
    %79 = vector.broadcast %78 : vector<64x1xf32> to vector<64x128xf32>
    %80 = arith.mulf %77, %79 : vector<64x128xf32>
    %c0_36 = arith.constant 0 : index
    %c128 = arith.constant 128 : index
    %81 = vector.load %arg11[%c0_36, %c128] : memref<64x256xf32, #tpu.memory_space<vmem>>, vector<64x128xf32>
    tpu.vector_store %arg11[%c0_36, %c128], %80 {strides = array<i32>} : memref<64x256xf32, #tpu.memory_space<vmem>>, vector<64x128xf32>,
    %c0_37 = arith.constant 0 : index
    %c0_38 = arith.constant 0 : index
    %82 = vector.load %arg11[%c0_37, %c0_38] : memref<64x256xf32, #tpu.memory_space<vmem>>, vector<64x256xf32>
    %83 = arith.truncf %82 : vector<64x256xf32> to vector<64x256xbf16>
    %c0_39 = arith.constant 0 : index
    %c0_40 = arith.constant 0 : index
    %84 = vector.load %arg9[%c0_39, %c0_40] : memref<256x256xbf16, #tpu.memory_space<vmem>>, vector<256x256xbf16>
    %cst_41 = arith.constant dense<0.000000e+00> : vector<64x256xf32>
    %85 = tpu.matmul %83, %84, %cst_41 {dimension_numbers = #tpu.dot_dimension_numbers<[1], [0], [0], [1], [0, 0, 1, 1], [], []>} : vector<64x256xbf16>, vector<256x256xbf16>, vector<64x256xf32> -> vector<64x256xf32>
    %c0_42 = arith.constant 0 : index
    %c0_43 = arith.constant 0 : index
    %c0_44 = arith.constant 0 : index
    %86 = vector.load %arg10[%c0_42, %c0_43, %c0_44] : memref<1x64x256xf32, #tpu.memory_space<vmem>>, vector<1x64x256xf32>
    %87 = vector.shape_cast %86 : vector<1x64x256xf32> to vector<64x256xf32>
    %88 = vector.shape_cast %85 : vector<64x256xf32> to vector<1x64x256xf32>
    tpu.vector_store %arg10[%c0_42, %c0_43, %c0_44], %88 {strides = array<i32>} : memref<1x64x256xf32, #tpu.memory_space<vmem>>, vector<1x64x256xf32>,
    return
  }
  func.func @transform_0(%arg0: i32, %arg1: i32) -> (i32, i32, i32) {
    %c0_i32 = arith.constant 0 : i32
    %c0_i32_0 = arith.constant 0 : i32
    %c0_i32_1 = arith.constant 0 : i32
    return %arg0, %c0_i32, %c0_i32_0 : i32, i32, i32
  }
  func.func @transform_1(%arg0: i32, %arg1: i32) -> (i32, i32) {
    %c0_i32 = arith.constant 0 : i32
    %c0_i32_0 = arith.constant 0 : i32
    %c0_i32_1 = arith.constant 0 : i32
    return %c0_i32, %c0_i32_0 : i32, i32
  }
  func.func @transform_2(%arg0: i32, %arg1: i32) -> (i32, i32) {
    %c0_i32 = arith.constant 0 : i32
    %c0_i32_0 = arith.constant 0 : i32
    %c0_i32_1 = arith.constant 0 : i32
    return %c0_i32, %c0_i32_0 : i32, i32
  }
  func.func @transform_3(%arg0: i32, %arg1: i32) -> (i32, i32) {
    %c0_i32 = arith.constant 0 : i32
    %c0_i32_0 = arith.constant 0 : i32
    return %arg1, %c0_i32 : i32, i32
  }
  func.func @transform_4(%arg0: i32, %arg1: i32) -> (i32, i32) {
    %c0_i32 = arith.constant 0 : i32
    %c0_i32_0 = arith.constant 0 : i32
    %c0_i32_1 = arith.constant 0 : i32
    return %c0_i32, %c0_i32_0 : i32, i32
  }
  func.func @transform_5(%arg0: i32, %arg1: i32) -> (i32, i32) {
    %c0_i32 = arith.constant 0 : i32
    %c0_i32_0 = arith.constant 0 : i32
    %c0_i32_1 = arith.constant 0 : i32
    return %c0_i32, %c0_i32_0 : i32, i32
  }
  func.func @transform_6(%arg0: i32, %arg1: i32) -> (i32, i32) {
    %c0_i32 = arith.constant 0 : i32
    %c0_i32_0 = arith.constant 0 : i32
    %c0_i32_1 = arith.constant 0 : i32
    return %c0_i32, %c0_i32_0 : i32, i32
  }
  func.func @transform_7(%arg0: i32, %arg1: i32) -> (i32, i32) {
    %c0_i32 = arith.constant 0 : i32
    %c0_i32_0 = arith.constant 0 : i32
    %c0_i32_1 = arith.constant 0 : i32
    return %c0_i32, %c0_i32_0 : i32, i32
  }
  func.func @transform_8(%arg0: i32, %arg1: i32) -> (i32, i32, i32) {
    %c0_i32 = arith.constant 0 : i32
    %c0_i32_0 = arith.constant 0 : i32
    return %arg0, %arg1, %c0_i32 : i32, i32, i32
  }
}

</mosaic_0001>

<llo_original>
// kernel: tpu_custom_call.1
$region0: #{tpu_custom_call.1}
  #allocation0 [shape = 'u32[]', space=smem, size = 0x4, offset = 0x4, fixed_abs, tag = 'smem constant byte address 0x4 - core index']
  #allocation1 [shape = 'u32[144,128]{1,0:T(1,128)}', space=vmem, size = 0x12000, scoped, tag = 'internal scratch']
  #allocation2 [shape = 'f32[64,256]{1,0:T(8,128)}', space=vmem, size = 0x10000, scoped, tag = 'scratch operand']
  %s0 = inlined_call_operand.hbm [shape: bf16[2,128,256], index: 0, kind: input, shape index: {}]
  %s1 = inlined_call_operand.hbm [shape: f32[128,128], index: 1, kind: input, shape index: {}]
  %s2 = inlined_call_operand.hbm [shape: f32[128,128], index: 2, kind: input, shape index: {}]
  %s3 = inlined_call_operand.hbm [shape: f32[128,128], index: 3, kind: input, shape index: {}]
  %s4 = inlined_call_operand.hbm [shape: bf16[256,256], index: 4, kind: input, shape index: {}]
  %s5 = inlined_call_operand.hbm [shape: bf16[256,256], index: 5, kind: input, shape index: {}]
  %s6 = inlined_call_operand.hbm [shape: bf16[256,256], index: 6, kind: input, shape index: {}]
  %s7 = inlined_call_operand.hbm [shape: bf16[256,256], index: 7, kind: input, shape index: {}]
  %s8 = inlined_call_operand.hbm [shape: f32[2,128,256], index: 8, kind: output, shape index: {}]
  %s9 = sld [smem:[#allocation0]]
  $region97: #{tpu_custom_call.1} parent=0
    _
  %s11 = ssub.s32 1, %s9
  %s12 = scalar_select 0, %s11, %s9
  $region1: #{tpu_custom_call.1} parent=0
    #allocation3 [shape = 'u8[131072]{0}', space=vmem, size = 0x20000, scoped, tag = 'input window, operand 0']
    #allocation4 [shape = 's32[2]{0}', space=sflag, size = 0x8, scoped, tag = 'scoped memory for tpu_custom_call.1']
    #allocation5 [shape = 's32[2]{0}', space=sflag, size = 0x8, scoped, tag = 'scoped memory for tpu_custom_call.1']
    #allocation6 [shape = 'u8[65536]{0}', space=vmem, size = 0x10000, scoped, tag = 'input window, operand 1, single buffered']
    #allocation7 [shape = 's32[1]{0}', space=sflag, size = 0x4, scoped, tag = 'scoped memory for tpu_custom_call.1']
    #allocation8 [shape = 'u8[65536]{0}', space=vmem, size = 0x10000, scoped, tag = 'input window, operand 2, single buffered']
    #allocation9 [shape = 'u8[65536]{0}', space=vmem, size = 0x10000, scoped, tag = 'input window, operand 3']
    #allocation10 [shape = 's32[2]{0}', space=sflag, size = 0x8, scoped, tag = 'scoped memory for tpu_custom_call.1']
    #allocation11 [shape = 'u8[131072]{0}', space=vmem, size = 0x20000, scoped, tag = 'input window, operand 4, single buffered']
    #allocation12 [shape = 'u8[131072]{0}', space=vmem, size = 0x20000, scoped, tag = 'input window, operand 5, single buffered']
    #allocation13 [shape = 's32[1]{0}', space=sflag, size = 0x4, scoped, tag = 'scoped memory for tpu_custom_call.1']
    #allocation14 [shape = 'u8[131072]{0}', space=vmem, size = 0x20000, scoped, tag = 'input window, operand 6, single buffered']
    #allocation15 [shape = 'u8[131072]{0}', space=vmem, size = 0x20000, scoped, tag = 'input window, operand 7, single buffered']
    #allocation16 [shape = 's32[1]{0}', space=sflag, size = 0x4, scoped, tag = 'scoped memory for tpu_custom_call.1']
    #allocation17 [shape = 'u8[131072]{0}', space=vmem, size = 0x20000, scoped, tag = 'output window, operand 0']
    %13 = vsyncpa [#allocation4], 0
    %s14 = scalar_lea.sflag [#allocation4], 1
    %15 = vsyncpa %s14, 0
    %16 = vsyncpa [#allocation7], 0
    %17 = vsyncpa [#allocation10], 0
    %s18 = scalar_lea.sflag [#allocation10], 1
    %19 = vsyncpa %s18, 0
    %20 = vsyncpa [#allocation13], 0
    %21 = vsyncpa [#allocation16], 0
    %22 = vsyncpa [#allocation5], 0
    %s23 = scalar_lea.sflag [#allocation5], 1
    %24 = vsyncpa %s23, 0
    loop: start=0, step=1, limit=6
    $region2: #{tpu_custom_call.1} parent=1 // loop_pre_header
      _
    $region3: #{tpu_custom_call.1} parent=1 // loop_header
      %s26 = sphi 0, %s30
      %p27 = scmp.ge.s32.totalorder %s26, 6
      %s33 = sphi 0, %s45
      %s34 = sphi 0, %s41
      %s35 = sphi 0, %s33
      %s36 = sphi 0, %s34
      %s37 = sphi 0, %s35
      %s38 = sphi 0, %s36
      %s48 = sphi 0, %s50
      %s51 = sphi 0, %s48
      %s52 = sphi 0, %s51
      %s68 = sphi 0, %s52
      %s72 = sphi 0, %s72
      %s74 = sphi 0, %s72
      %s75 = sphi 0, %s74
      %s89 = sphi 0, %s75
      %s93 = sphi 0, %s93
      %s95 = sphi 0, %s93
      %s96 = sphi 0, %s95
      %s110 = sphi 0, %s96
      %s116 = sphi 0, %s118
      %s119 = sphi 0, %s116
      %s120 = sphi 0, %s119
      %s136 = sphi 0, %s120
      %s140 = sphi 0, %s140
      %s142 = sphi 0, %s140
      %s143 = sphi 0, %s142
      %s157 = sphi 0, %s143
      %s161 = sphi 0, %s161
      %s163 = sphi 0, %s161
      %s164 = sphi 0, %s163
      %s178 = sphi 0, %s164
      %s182 = sphi 0, %s182
      %s184 = sphi 0, %s182
      %s185 = sphi 0, %s184
      %s199 = sphi 0, %s185
      %s203 = sphi 0, %s203
      %s205 = sphi 0, %s203
      %s206 = sphi 0, %s205
      %s220 = sphi 0, %s206
      %s228 = sphi 0, %s230
      %s231 = sphi 0, %s228
      %s232 = sphi 0, %s231
      %s248 = sphi 0, %s232
    $region4: #{tpu_custom_call.1} parent=1 // loop_header_branch
      %29 = sbr.rel (%p27) target = $region8
    $region5: #{tpu_custom_call.1} parent=1 // loop_body
      %s31 = ssub.s32 %s26, 1
      %s32 = ssub.s32 %s26, 2
      %s39 = sadd.s32 1, %s34
      %p40 = scmp.ge.s32.totalorder %s39, 2
      %s41 = scalar_select %p40, 0, %s39
      %s42 = sadd.s32 1, %s33
      %s43 = scalar_select %p40, %s42, %s33
      %p44 = scmp.ge.s32.totalorder %s43, 2
      %s45 = scalar_select %p44, 0, %s43
      %s46 = ssub.s32 %s33, %s45
      %p47 = scmp.eq.s32.totalorder %s46, 0
      %s49 = sadd.s32 %s48, 1
      %s50 = scalar_select %p47, %s48, %s49
      %p53 = pneg %p47
      %p54 = scmp.eq.s32.totalorder %s26, 3
      %p55 = por %p53, %p54
      %p56 = scmp.ne.s32.totalorder %s48, %s51
      %p57 = scmp.eq.s32.totalorder %s26, 0
      %p58 = por %p56, %p57
      %p59 = scmp.ne.s32.totalorder %s48, %s51
      %p60 = scmp.eq.s32.totalorder %s31, 3
      %p61 = por %p59, %p60
      %p62 = scmp.ne.s32.totalorder %s51, %s52
      %p63 = scmp.eq.s32.totalorder %s31, 0
      %p64 = por %p62, %p63
      %p65 = scmp.ne.s32.totalorder %s51, %s52
      %p66 = scmp.eq.s32.totalorder %s32, 3
      %p67 = por %p65, %p66
      %p69 = scmp.ne.s32.totalorder %s52, %s68
      %p70 = scmp.eq.s32.totalorder %s32, 0
      %p71 = por %p69, %p70
      %s73 = sadd.s32 %s72, 1
      %p76 = scmp.eq.s32.totalorder %s26, 3
      %p77 = scmp.ne.s32.totalorder %s72, %s74
      %p78 = scmp.eq.s32.totalorder %s26, 0
      %p79 = por %p77, %p78
      %p80 = scmp.ne.s32.totalorder %s72, %s74
      %p81 = scmp.eq.s32.totalorder %s31, 3
      %p82 = por %p80, %p81
      %p83 = scmp.ne.s32.totalorder %s74, %s75
      %p84 = scmp.eq.s32.totalorder %s31, 0
      %p85 = por %p83, %p84
      %p86 = scmp.ne.s32.totalorder %s74, %s75
      %p87 = scmp.eq.s32.totalorder %s32, 3
      %p88 = por %p86, %p87
      %p90 = scmp.ne.s32.totalorder %s75, %s89
      %p91 = scmp.eq.s32.totalorder %s32, 0
      %p92 = por %p90, %p91
      %s94 = sadd.s32 %s93, 1
      %p97 = scmp.eq.s32.totalorder %s26, 3
      %p98 = scmp.ne.s32.totalorder %s93, %s95
      %p99 = scmp.eq.s32.totalorder %s26, 0
      %p100 = por %p98, %p99
      %p101 = scmp.ne.s32.totalorder %s93, %s95
      %p102 = scmp.eq.s32.totalorder %s31, 3
      %p103 = por %p101, %p102
      %p104 = scmp.ne.s32.totalorder %s95, %s96
      %p105 = scmp.eq.s32.totalorder %s31, 0
      %p106 = por %p104, %p105
      %p107 = scmp.ne.s32.totalorder %s95, %s96
      %p108 = scmp.eq.s32.totalorder %s32, 3
      %p109 = por %p107, %p108
      %p111 = scmp.ne.s32.totalorder %s96, %s110
      %p112 = scmp.eq.s32.totalorder %s32, 0
      %p113 = por %p111, %p112
      %s114 = ssub.s32 %s34, %s41
      %p115 = scmp.eq.s32.totalorder %s114, 0
      %s117 = sadd.s32 %s116, 1
      %s118 = scalar_select %p115, %s116, %s117
      %p121 = pneg %p115
      %p122 = scmp.eq.s32.totalorder %s26, 3
      %p123 = por %p121, %p122
      %p124 = scmp.ne.s32.totalorder %s116, %s119
      %p125 = scmp.eq.s32.totalorder %s26, 0
      %p126 = por %p124, %p125
      %p127 = scmp.ne.s32.totalorder %s116, %s119
      %p128 = scmp.eq.s32.totalorder %s31, 3
      %p129 = por %p127, %p128
      %p130 = scmp.ne.s32.totalorder %s119, %s120
      %p131 = scmp.eq.s32.totalorder %s31, 0
      %p132 = por %p130, %p131
      %p133 = scmp.ne.s32.totalorder %s119, %s120
      %p134 = scmp.eq.s32.totalorder %s32, 3
      %p135 = por %p133, %p134
      %p137 = scmp.ne.s32.totalorder %s120, %s136
      %p138 = scmp.eq.s32.totalorder %s32, 0
      %p139 = por %p137, %p138
      %s141 = sadd.s32 %s140, 1
      %p144 = scmp.eq.s32.totalorder %s26, 3
      %p145 = scmp.ne.s32.totalorder %s140, %s142
      %p146 = scmp.eq.s32.totalorder %s26, 0
      %p147 = por %p145, %p146
      %p148 = scmp.ne.s32.totalorder %s140, %s142
      %p149 = scmp.eq.s32.totalorder %s31, 3
      %p150 = por %p148, %p149
      %p151 = scmp.ne.s32.totalorder %s142, %s143
      %p152 = scmp.eq.s32.totalorder %s31, 0
      %p153 = por %p151, %p152
      %p154 = scmp.ne.s32.totalorder %s142, %s143
      %p155 = scmp.eq.s32.totalorder %s32, 3
      %p156 = por %p154, %p155
      %p158 = scmp.ne.s32.totalorder %s143, %s157
      %p159 = scmp.eq.s32.totalorder %s32, 0
      %p160 = por %p158, %p159
      %s162 = sadd.s32 %s161, 1
      %p165 = scmp.eq.s32.totalorder %s26, 3
      %p166 = scmp.ne.s32.totalorder %s161, %s163
      %p167 = scmp.eq.s32.totalorder %s26, 0
      %p168 = por %p166, %p167
      %p169 = scmp.ne.s32.totalorder %s161, %s163
      %p170 = scmp.eq.s32.totalorder %s31, 3
      %p171 = por %p169, %p170
      %p172 = scmp.ne.s32.totalorder %s163, %s164
      %p173 = scmp.eq.s32.totalorder %s31, 0
      %p174 = por %p172, %p173
      %p175 = scmp.ne.s32.totalorder %s163, %s164
      %p176 = scmp.eq.s32.totalorder %s32, 3
      %p177 = por %p175, %p176
      %p179 = scmp.ne.s32.totalorder %s164, %s178
      %p180 = scmp.eq.s32.totalorder %s32, 0
      %p181 = por %p179, %p180
      %s183 = sadd.s32 %s182, 1
      %p186 = scmp.eq.s32.totalorder %s26, 3
      %p187 = scmp.ne.s32.totalorder %s182, %s184
      %p188 = scmp.eq.s32.totalorder %s26, 0
      %p189 = por %p187, %p188
      %p190 = scmp.ne.s32.totalorder %s182, %s184
      %p191 = scmp.eq.s32.totalorder %s31, 3
      %p192 = por %p190, %p191
      %p193 = scmp.ne.s32.totalorder %s184, %s185
      %p194 = scmp.eq.s32.totalorder %s31, 0
      %p195 = por %p193, %p194
      %p196 = scmp.ne.s32.totalorder %s184, %s185
      %p197 = scmp.eq.s32.totalorder %s32, 3
      %p198 = por %p196, %p197
      %p200 = scmp.ne.s32.totalorder %s185, %s199
      %p201 = scmp.eq.s32.totalorder %s32, 0
      %p202 = por %p200, %p201
      %s204 = sadd.s32 %s203, 1
      %p207 = scmp.eq.s32.totalorder %s26, 3
      %p208 = scmp.ne.s32.totalorder %s203, %s205
      %p209 = scmp.eq.s32.totalorder %s26, 0
      %p210 = por %p208, %p209
      %p211 = scmp.ne.s32.totalorder %s203, %s205
      %p212 = scmp.eq.s32.totalorder %s31, 3
      %p213 = por %p211, %p212
      %p214 = scmp.ne.s32.totalorder %s205, %s206
      %p215 = scmp.eq.s32.totalorder %s31, 0
      %p216 = por %p214, %p215
      %p217 = scmp.ne.s32.totalorder %s205, %s206
      %p218 = scmp.eq.s32.totalorder %s32, 3
      %p219 = por %p217, %p218
      %p221 = scmp.ne.s32.totalorder %s206, %s220
      %p222 = scmp.eq.s32.totalorder %s32, 0
      %p223 = por %p221, %p222
      %s224 = ssub.s32 %s33, %s45
      %s225 = ssub.s32 %s34, %s41
      %s226 = sor.u32 %s224, %s225
      %p227 = scmp.eq.s32.totalorder %s226, 0
      %s229 = sadd.s32 %s228, 1
      %s230 = scalar_select %p227, %s228, %s229
      %p233 = pneg %p227
      %p234 = scmp.eq.s32.totalorder %s26, 3
      %p235 = por %p233, %p234
      %p236 = scmp.ne.s32.totalorder %s228, %s231
      %p237 = scmp.eq.s32.totalorder %s26, 0
      %p238 = por %p236, %p237
      %p239 = scmp.ne.s32.totalorder %s228, %s231
      %p240 = scmp.eq.s32.totalorder %s31, 3
      %p241 = por %p239, %p240
      %p242 = scmp.ne.s32.totalorder %s231, %s232
      %p243 = scmp.eq.s32.totalorder %s31, 0
      %p244 = por %p242, %p243
      %p245 = scmp.ne.s32.totalorder %s231, %s232
      %p246 = scmp.eq.s32.totalorder %s32, 3
      %p247 = por %p245, %p246
      %p249 = scmp.ne.s32.totalorder %s232, %s248
      %p250 = scmp.eq.s32.totalorder %s32, 0
      %p251 = por %p249, %p250
      %p252 = scmp.le.s32.totalorder 1, %s26
      %p253 = scmp.lt.s32.totalorder %s26, 5
      %p254 = pnand %p252, %p253
      %p255 = pneg %p254
      // Predicated region
      $region9: #{tpu_custom_call.1} parent=5 // pred_check
        _
      $region10: #{tpu_custom_call.1} parent=5 // pred_check_branch
        %257 = sbr.rel (%p254) target = $region12
      $region11: #{tpu_custom_call.1} parent=5 // pred_region
        %s258 = ssub.s32 %s26, 1
        // Predicated region
        $region13: #{tpu_custom_call.1} parent=11 // pred_check
          %p259 = pneg %p85
        $region14: #{tpu_custom_call.1} parent=11 // pred_check_branch
          %261 = sbr.rel (%p259) target = $region16
        $region15: #{tpu_custom_call.1} parent=11 // pred_region
          %s263 = ssub.s32 2048, 2048
          %264 = vsyncadd [#allocation7], %s263
          %s265 = sshll.u32 [#allocation6], 4
          %s266 = int_to_ptr.vmem [resolvable:$true] %s265
          %271 = dma.hbm_to_vmem [thread:$0]  %s1, 2048, %s266, [#allocation7], 128, 128, 8
        $region16: #{tpu_custom_call.1} parent=11 // pred_fallthru
          _
        // Predicated region
        $region17: #{tpu_custom_call.1} parent=11 // pred_check
          %p272 = pneg %p106
        $region18: #{tpu_custom_call.1} parent=11 // pred_check_branch
          %274 = sbr.rel (%p272) target = $region20
        $region19: #{tpu_custom_call.1} parent=11 // pred_region
          %s276 = ssub.s32 2048, 2048
          %277 = vsyncadd [#allocation7], %s276
          %s278 = sshll.u32 [#allocation8], 4
          %s279 = int_to_ptr.vmem [resolvable:$true] %s278
          %284 = dma.hbm_to_vmem [thread:$0]  %s2, 2048, %s279, [#allocation7], 128, 128, 8
        $region20: #{tpu_custom_call.1} parent=11 // pred_fallthru
          _
        // Predicated region
        $region21: #{tpu_custom_call.1} parent=11 // pred_check
          %p285 = pneg %p153
        $region22: #{tpu_custom_call.1} parent=11 // pred_check_branch
          %287 = sbr.rel (%p285) target = $region24
        $region23: #{tpu_custom_call.1} parent=11 // pred_region
          %s289 = ssub.s32 4096, 4096
          %290 = vsyncadd [#allocation10], %s289
          %s291 = sshll.u32 [#allocation11], 4
          %s292 = int_to_ptr.vmem [resolvable:$true] %s291
          %297 = dma.hbm_to_vmem [thread:$0]  %s4, 4096, %s292, [#allocation10], 128, 128, 8
        $region24: #{tpu_custom_call.1} parent=11 // pred_fallthru
          _
        // Predicated region
        $region25: #{tpu_custom_call.1} parent=11 // pred_check
          %p298 = pneg %p174
        $region26: #{tpu_custom_call.1} parent=11 // pred_check_branch
          %300 = sbr.rel (%p298) target = $region28
        $region27: #{tpu_custom_call.1} parent=11 // pred_region
          %s302 = ssub.s32 4096, 4096
          %303 = vsyncadd [#allocation13], %s302
          %s304 = sshll.u32 [#allocation12], 4
          %s305 = int_to_ptr.vmem [resolvable:$true] %s304
          %310 = dma.hbm_to_vmem [thread:$0]  %s5, 4096, %s305, [#allocation13], 128, 128, 8
        $region28: #{tpu_custom_call.1} parent=11 // pred_fallthru
          _
        // Predicated region
        $region29: #{tpu_custom_call.1} parent=11 // pred_check
          %p311 = pneg %p195
        $region30: #{tpu_custom_call.1} parent=11 // pred_check_branch
          %313 = sbr.rel (%p311) target = $region32
        $region31: #{tpu_custom_call.1} parent=11 // pred_region
          %s315 = ssub.s32 4096, 4096
          %316 = vsyncadd [#allocation13], %s315
          %s317 = sshll.u32 [#allocation14], 4
          %s318 = int_to_ptr.vmem [resolvable:$true] %s317
          %323 = dma.hbm_to_vmem [thread:$0]  %s6, 4096, %s318, [#allocation13], 128, 128, 8
        $region32: #{tpu_custom_call.1} parent=11 // pred_fallthru
          _
        // Predicated region
        $region33: #{tpu_custom_call.1} parent=11 // pred_check
          %p324 = pneg %p216
        $region34: #{tpu_custom_call.1} parent=11 // pred_check_branch
          %326 = sbr.rel (%p324) target = $region36
        $region35: #{tpu_custom_call.1} parent=11 // pred_region
          %s328 = ssub.s32 4096, 4096
          %329 = vsyncadd [#allocation16], %s328
          %s330 = sshll.u32 [#allocation15], 4
          %s331 = int_to_ptr.vmem [resolvable:$true] %s330
          %336 = dma.hbm_to_vmem [thread:$0]  %s7, 4096, %s331, [#allocation16], 128, 128, 8
        $region36: #{tpu_custom_call.1} parent=11 // pred_fallthru
          _
      $region12: #{tpu_custom_call.1} parent=5 // pred_fallthru
        _
      %p337 = scmp.lt.s32.totalorder %s26, 4
      // Predicated region
      $region37: #{tpu_custom_call.1} parent=5 // pred_check
        %p338 = pneg %p337
      $region38: #{tpu_custom_call.1} parent=5 // pred_check_branch
        %340 = sbr.rel (%p338) target = $region40
      $region39: #{tpu_custom_call.1} parent=5 // pred_region
        // Predicated region
        $region41: #{tpu_custom_call.1} parent=39 // pred_check
          %p341 = pneg %p58
        $region42: #{tpu_custom_call.1} parent=39 // pred_check_branch
          %343 = sbr.rel (%p341) target = $region44
        $region43: #{tpu_custom_call.1} parent=39 // pred_region
          %s344 = sand.u32 %s48, 1
          %s345 = scalar_lea.sflag [#allocation4], %s344
          %s346 = sand.u32 %s48, 1
          %s347 = smul.addr %s346, 128
          %s348 = scalar_lea.vmem [#allocation3], %s347
          %s350 = ssub.s32 2048, 2048
          %351 = vsyncadd %s345, %s350
          %s352 = smul.addr %s33, 32
          %s353 = smul.addr %s352, 64
          %s354 = scalar_lea.hbm %s0, %s353
          %s355 = sshll.u32 %s348, 4
          %s356 = int_to_ptr.vmem [resolvable:$true] %s355
          %361 = dma.hbm_to_vmem [thread:$0]  %s354, 2048, %s356, %s345, 128, 128, 8
        $region44: #{tpu_custom_call.1} parent=39 // pred_fallthru
          _
        // Predicated region
        $region45: #{tpu_custom_call.1} parent=39 // pred_check
          %p362 = pneg %p126
        $region46: #{tpu_custom_call.1} parent=39 // pred_check_branch
          %364 = sbr.rel (%p362) target = $region48
        $region47: #{tpu_custom_call.1} parent=39 // pred_region
          %s365 = sand.u32 %s26, 1
          %s366 = scalar_lea.sflag [#allocation10], %s365
          %s367 = sand.u32 %s116, 1
          %s368 = smul.addr %s367, 64
          %s369 = scalar_lea.vmem [#allocation9], %s368
          %s370 = smul.u32 8, %s34
          %s372 = ssub.s32 1024, 1024
          %373 = vsyncadd %s366, %s372
          %s374 = smul.addr %s370, 128
          %s375 = scalar_lea.hbm %s3, %s374
          %s376 = sshll.u32 %s369, 4
          %s377 = int_to_ptr.vmem [resolvable:$true] %s376
          %382 = dma.hbm_to_vmem [thread:$0]  %s375, 1024, %s377, %s366, 128, 128, 8
        $region48: #{tpu_custom_call.1} parent=39 // pred_fallthru
          _
      $region40: #{tpu_custom_call.1} parent=5 // pred_fallthru
        _
      %p383 = scmp.le.s32.totalorder 1, %s26
      %p384 = scmp.lt.s32.totalorder %s26, 5
      %p385 = pnand %p383, %p384
      %p386 = pneg %p385
      // Predicated region
      $region49: #{tpu_custom_call.1} parent=5 // pred_check
        _
      $region50: #{tpu_custom_call.1} parent=5 // pred_check_branch
        %388 = sbr.rel (%p385) target = $region52
      $region51: #{tpu_custom_call.1} parent=5 // pred_region
        %s389 = ssub.s32 %s26, 1
        %s390 = sand.u32 %s51, 1
        %s391 = scalar_lea.sflag [#allocation4], %s390
        %s392 = sand.u32 %s51, 1
        %s393 = smul.addr %s392, 128
        %s394 = scalar_lea.vmem [#allocation3], %s393
        // Predicated region
        $region53: #{tpu_custom_call.1} parent=51 // pred_check
          %p395 = pneg %p64
        $region54: #{tpu_custom_call.1} parent=51 // pred_check_branch
          %397 = sbr.rel (%p395) target = $region56
        $region55: #{tpu_custom_call.1} parent=51 // pred_region
          %398 = dma.done %s391, 2048
        $region56: #{tpu_custom_call.1} parent=51 // pred_fallthru
          _
        // Predicated region
        $region57: #{tpu_custom_call.1} parent=51 // pred_check
          %p399 = pneg %p85
        $region58: #{tpu_custom_call.1} parent=51 // pred_check_branch
          %401 = sbr.rel (%p399) target = $region60
        $region59: #{tpu_custom_call.1} parent=51 // pred_region
          %402 = dma.done [#allocation7], 2048
        $region60: #{tpu_custom_call.1} parent=51 // pred_fallthru
          _
        // Predicated region
        $region61: #{tpu_custom_call.1} parent=51 // pred_check
          %p403 = pneg %p106
        $region62: #{tpu_custom_call.1} parent=51 // pred_check_branch
          %405 = sbr.rel (%p403) target = $region64
        $region63: #{tpu_custom_call.1} parent=51 // pred_region
          %406 = dma.done [#allocation7], 2048
        $region64: #{tpu_custom_call.1} parent=51 // pred_fallthru
          _
        %s407 = sand.u32 %s31, 1
        %s408 = scalar_lea.sflag [#allocation10], %s407
        %s409 = sand.u32 %s119, 1
        %s410 = smul.addr %s409, 64
        %s411 = scalar_lea.vmem [#allocation9], %s410
        // Predicated region
        $region65: #{tpu_custom_call.1} parent=51 // pred_check
          %p412 = pneg %p132
        $region66: #{tpu_custom_call.1} parent=51 // pred_check_branch
          %414 = sbr.rel (%p412) target = $region68
        $region67: #{tpu_custom_call.1} parent=51 // pred_region
          %415 = dma.done %s408, 1024
        $region68: #{tpu_custom_call.1} parent=51 // pred_fallthru
          _
        // Predicated region
        $region69: #{tpu_custom_call.1} parent=51 // pred_check
          %p416 = pneg %p153
        $region70: #{tpu_custom_call.1} parent=51 // pred_check_branch
          %418 = sbr.rel (%p416) target = $region72
        $region71: #{tpu_custom_call.1} parent=51 // pred_region
          %419 = dma.done [#allocation10], 4096
        $region72: #{tpu_custom_call.1} parent=51 // pred_fallthru
          _
        // Predicated region
        $region73: #{tpu_custom_call.1} parent=51 // pred_check
          %p420 = pneg %p174
        $region74: #{tpu_custom_call.1} parent=51 // pred_check_branch
          %422 = sbr.rel (%p420) target = $region76
        $region75: #{tpu_custom_call.1} parent=51 // pred_region
          %423 = dma.done [#allocation13], 4096
        $region76: #{tpu_custom_call.1} parent=51 // pred_fallthru
          _
        // Predicated region
        $region77: #{tpu_custom_call.1} parent=51 // pred_check
          %p424 = pneg %p195
        $region78: #{tpu_custom_call.1} parent=51 // pred_check_branch
          %426 = sbr.rel (%p424) target = $region80
        $region79: #{tpu_custom_call.1} parent=51 // pred_region
          %427 = dma.done [#allocation13], 4096
        $region80: #{tpu_custom_call.1} parent=51 // pred_fallthru
          _
        // Predicated region
        $region81: #{tpu_custom_call.1} parent=51 // pred_check
          %p428 = pneg %p216
        $region82: #{tpu_custom_call.1} parent=51 // pred_check_branch
          %430 = sbr.rel (%p428) target = $region84
        $region83: #{tpu_custom_call.1} parent=51 // pred_region
          %431 = dma.done [#allocation16], 4096
        $region84: #{tpu_custom_call.1} parent=51 // pred_fallthru
          _
        %s432 = sand.u32 %s51, 1
        %s433 = scalar_lea.sflag [#allocation4], %s432
        %s434 = sand.u32 %s51, 1
        %s435 = smul.addr %s434, 128
        %s436 = scalar_lea.vmem [#allocation3], %s435
        %p437 = pneg %p64
        %p438 = pneg %p61
        %p439 = pneg %p85
        %p440 = pneg %p82
        %p441 = pneg %p106
        %p442 = pneg %p103
        %s443 = sand.u32 %s31, 1
        %s444 = scalar_lea.sflag [#allocation10], %s443
        %s445 = sand.u32 %s119, 1
        %s446 = smul.addr %s445, 64
        %s447 = scalar_lea.vmem [#allocation9], %s446
        %p448 = pneg %p132
        %p449 = pneg %p129
        %p450 = pneg %p153
        %p451 = pneg %p150
        %p452 = pneg %p174
        %p453 = pneg %p171
        %p454 = pneg %p195
        %p455 = pneg %p192
        %p456 = pneg %p216
        %p457 = pneg %p213
        %p458 = pneg %p244
        %p459 = pneg %p241
        %s460 = sand.u32 %s231, 1
        %s461 = scalar_lea.sflag [#allocation5], %s460
        %s462 = sand.u32 %s231, 1
        %s463 = smul.addr %s462, 128
        %s464 = scalar_lea.vmem [#allocation17], %s463
        %s465 = smul.u32 8, %s36
        %s466 = smul.u32 8, %s36
        %s468 = smul.u32 %s36, 64
        %v469 = vld [vmem:[%s394] sm:$0xff]
        %v470 = vld [vmem:[%s394 + $0x8] sm:$0xff]
        %v471 = vld [vmem:[%s394 + $0x10] sm:$0xff]
        %v472 = vld [vmem:[%s394 + $0x18] sm:$0xff]
        %v473 = vld [vmem:[%s394 + $0x20] sm:$0xff]
        %v474 = vld [vmem:[%s394 + $0x28] sm:$0xff]
        %v475 = vld [vmem:[%s394 + $0x30] sm:$0xff]
        %v476 = vld [vmem:[%s394 + $0x38] sm:$0xff]
        %v477 = vld [vmem:[%s394 + $0x40] sm:$0xff]
        %v478 = vld [vmem:[%s394 + $0x48] sm:$0xff]
        %v479 = vld [vmem:[%s394 + $0x50] sm:$0xff]
        %v480 = vld [vmem:[%s394 + $0x58] sm:$0xff]
        %v481 = vld [vmem:[%s394 + $0x60] sm:$0xff]
        %v482 = vld [vmem:[%s394 + $0x68] sm:$0xff]
        %v483 = vld [vmem:[%s394 + $0x70] sm:$0xff]
        %v484 = vld [vmem:[%s394 + $0x78] sm:$0xff]
        %s485 = sshra.s32 %s468, 3
        %s486 = sand.u32 %s468, 7
        %s487 = smul.u32 %s485, 2
        %s488 = smul.addr %s487, 4
        %s489 = scalar_lea.vmem %s394, %s488 [#allocation3]
        %v490 = vld [vmem:[%s489] sm:$0xff]
        %v491 = vld [vmem:[%s489 + $0x8] sm:$0xff]
        %v492 = vld [vmem:[%s489 + $0x10] sm:$0xff]
        %v493 = vld [vmem:[%s489 + $0x18] sm:$0xff]
        %v494 = vld [vmem:[%s489 + $0x20] sm:$0xff]
        %v495 = vld [vmem:[%s489 + $0x28] sm:$0xff]
        %v496 = vld [vmem:[%s489 + $0x30] sm:$0xff]
        %v497 = vld [vmem:[%s489 + $0x38] sm:$0xff]
        %v498 = vld [vmem:[#allocation11] sm:$0xff]
        %v499 = vld [vmem:[#allocation11 + $0x8] sm:$0xff]
        %v500 = vld [vmem:[#allocation11 + $0x10] sm:$0xff]
        %v501 = vld [vmem:[#allocation11 + $0x18] sm:$0xff]
        %v502 = vld [vmem:[#allocation11 + $0x20] sm:$0xff]
        %v503 = vld [vmem:[#allocation11 + $0x28] sm:$0xff]
        %v504 = vld [vmem:[#allocation11 + $0x30] sm:$0xff]
        %v505 = vld [vmem:[#allocation11 + $0x38] sm:$0xff]
        %v506 = vld [vmem:[#allocation11 + $0x40] sm:$0xff]
        %v507 = vld [vmem:[#allocation11 + $0x48] sm:$0xff]
        %v508 = vld [vmem:[#allocation11 + $0x50] sm:$0xff]
        %v509 = vld [vmem:[#allocation11 + $0x58] sm:$0xff]
        %v510 = vld [vmem:[#allocation11 + $0x60] sm:$0xff]
        %v511 = vld [vmem:[#allocation11 + $0x68] sm:$0xff]
        %v512 = vld [vmem:[#allocation11 + $0x70] sm:$0xff]
        %v513 = vld [vmem:[#allocation11 + $0x78] sm:$0xff]
        %v514 = vld [vmem:[#allocation11 + $0x80] sm:$0xff]
        %v515 = vld [vmem:[#allocation11 + $0x88] sm:$0xff]
        %v516 = vld [vmem:[#allocation11 + $0x90] sm:$0xff]
        %v517 = vld [vmem:[#allocation11 + $0x98] sm:$0xff]
        %v518 = vld [vmem:[#allocation11 + $0xa0] sm:$0xff]
        %v519 = vld [vmem:[#allocation11 + $0xa8] sm:$0xff]
        %v520 = vld [vmem:[#allocation11 + $0xb0] sm:$0xff]
        %v521 = vld [vmem:[#allocation11 + $0xb8] sm:$0xff]
        %v522 = vld [vmem:[#allocation11 + $0xc0] sm:$0xff]
        %v523 = vld [vmem:[#allocation11 + $0xc8] sm:$0xff]
        %v524 = vld [vmem:[#allocation11 + $0xd0] sm:$0xff]
        %v525 = vld [vmem:[#allocation11 + $0xd8] sm:$0xff]
        %v526 = vld [vmem:[#allocation11 + $0xe0] sm:$0xff]
        %v527 = vld [vmem:[#allocation11 + $0xe8] sm:$0xff]
        %v528 = vld [vmem:[#allocation11 + $0xf0] sm:$0xff]
        %v529 = vld [vmem:[#allocation11 + $0xf8] sm:$0xff]
        %v538 = vunpack.c.l.b16 %v490
        %v539 = vunpack.c.h.b16 %v490
        %v540 = vunpack.c.l.b16 %v491
        %v541 = vunpack.c.h.b16 %v491
        %v542 = vunpack.c.l.b16 %v492
        %v543 = vunpack.c.h.b16 %v492
        %v544 = vunpack.c.l.b16 %v493
        %v545 = vunpack.c.h.b16 %v493
        %v546 = vunpack.c.l.b16 %v494
        %v547 = vunpack.c.h.b16 %v494
        %v548 = vunpack.c.l.b16 %v495
        %v549 = vunpack.c.h.b16 %v495
        %v550 = vunpack.c.l.b16 %v496
        %v551 = vunpack.c.h.b16 %v496
        %v552 = vunpack.c.l.b16 %v497
        %v553 = vunpack.c.h.b16 %v497
        %v554 = vpack.c.b16 %v540, %v538
        %v555 = vpack.c.b16 %v541, %v539
        %v556 = vpack.c.b16 %v544, %v542
        %v557 = vpack.c.b16 %v545, %v543
        %v558 = vpack.c.b16 %v548, %v546
        %v559 = vpack.c.b16 %v549, %v547
        %v560 = vpack.c.b16 %v552, %v550
        %v561 = vpack.c.b16 %v553, %v551
        %v602 = vunpack.c.l.b16 %v498
        %v603 = vunpack.c.h.b16 %v498
        %v604 = vunpack.c.l.b16 %v499
        %v605 = vunpack.c.h.b16 %v499
        %v606 = vunpack.c.l.b16 %v500
        %v607 = vunpack.c.h.b16 %v500
        %v608 = vunpack.c.l.b16 %v501
        %v609 = vunpack.c.h.b16 %v501
        %v610 = vunpack.c.l.b16 %v502
        %v611 = vunpack.c.h.b16 %v502
        %v612 = vunpack.c.l.b16 %v503
        %v613 = vunpack.c.h.b16 %v503
        %v614 = vunpack.c.l.b16 %v504
        %v615 = vunpack.c.h.b16 %v504
        %v616 = vunpack.c.l.b16 %v505
        %v617 = vunpack.c.h.b16 %v505
        %v618 = vunpack.c.l.b16 %v506
        %v619 = vunpack.c.h.b16 %v506
        %v620 = vunpack.c.l.b16 %v507
        %v621 = vunpack.c.h.b16 %v507
        %v622 = vunpack.c.l.b16 %v508
        %v623 = vunpack.c.h.b16 %v508
        %v624 = vunpack.c.l.b16 %v509
        %v625 = vunpack.c.h.b16 %v509
        %v626 = vunpack.c.l.b16 %v510
        %v627 = vunpack.c.h.b16 %v510
        %v628 = vunpack.c.l.b16 %v511
        %v629 = vunpack.c.h.b16 %v511
        %v630 = vunpack.c.l.b16 %v512
        %v631 = vunpack.c.h.b16 %v512
        %v632 = vunpack.c.l.b16 %v513
        %v633 = vunpack.c.h.b16 %v513
        %v634 = vunpack.c.l.b16 %v514
        %v635 = vunpack.c.h.b16 %v514
        %v636 = vunpack.c.l.b16 %v515
        %v637 = vunpack.c.h.b16 %v515
        %v638 = vunpack.c.l.b16 %v516
        %v639 = vunpack.c.h.b16 %v516
        %v640 = vunpack.c.l.b16 %v517
        %v641 = vunpack.c.h.b16 %v517
        %v642 = vunpack.c.l.b16 %v518
        %v643 = vunpack.c.h.b16 %v518
        %v644 = vunpack.c.l.b16 %v519
        %v645 = vunpack.c.h.b16 %v519
        %v646 = vunpack.c.l.b16 %v520
        %v647 = vunpack.c.h.b16 %v520
        %v648 = vunpack.c.l.b16 %v521
        %v649 = vunpack.c.h.b16 %v521
        %v650 = vunpack.c.l.b16 %v522
        %v651 = vunpack.c.h.b16 %v522
        %v652 = vunpack.c.l.b16 %v523
        %v653 = vunpack.c.h.b16 %v523
        %v654 = vunpack.c.l.b16 %v524
        %v655 = vunpack.c.h.b16 %v524
        %v656 = vunpack.c.l.b16 %v525
        %v657 = vunpack.c.h.b16 %v525
        %v658 = vunpack.c.l.b16 %v526
        %v659 = vunpack.c.h.b16 %v526
        %v660 = vunpack.c.l.b16 %v527
        %v661 = vunpack.c.h.b16 %v527
        %v662 = vunpack.c.l.b16 %v528
        %v663 = vunpack.c.h.b16 %v528
        %v664 = vunpack.c.l.b16 %v529
        %v665 = vunpack.c.h.b16 %v529
        %v666 = vpack.c.b16 %v604, %v602
        %v667 = vpack.c.b16 %v605, %v603
        %v668 = vpack.c.b16 %v608, %v606
        %v669 = vpack.c.b16 %v609, %v607
        %v670 = vpack.c.b16 %v612, %v610
        %v671 = vpack.c.b16 %v613, %v611
        %v672 = vpack.c.b16 %v616, %v614
        %v673 = vpack.c.b16 %v617, %v615
        %v674 = vpack.c.b16 %v620, %v618
        %v675 = vpack.c.b16 %v621, %v619
        %v676 = vpack.c.b16 %v624, %v622
        %v677 = vpack.c.b16 %v625, %v623
        %v678 = vpack.c.b16 %v628, %v626
        %v679 = vpack.c.b16 %v629, %v627
        %v680 = vpack.c.b16 %v632, %v630
        %v681 = vpack.c.b16 %v633, %v631
        %v682 = vpack.c.b16 %v636, %v634
        %v683 = vpack.c.b16 %v637, %v635
        %v684 = vpack.c.b16 %v640, %v638
        %v685 = vpack.c.b16 %v641, %v639
        %v686 = vpack.c.b16 %v644, %v642
        %v687 = vpack.c.b16 %v645, %v643
        %v688 = vpack.c.b16 %v648, %v646
        %v689 = vpack.c.b16 %v649, %v647
        %v690 = vpack.c.b16 %v652, %v650
        %v691 = vpack.c.b16 %v653, %v651
        %v692 = vpack.c.b16 %v656, %v654
        %v693 = vpack.c.b16 %v657, %v655
        %v694 = vpack.c.b16 %v660, %v658
        %v695 = vpack.c.b16 %v661, %v659
        %v696 = vpack.c.b16 %v664, %v662
        %v697 = vpack.c.b16 %v665, %v663
        %730 = vmatprep.subr.bf16.mxu0 %v667
        %731 = vmatpush1.bf16.msra.mxu0 %v666
        %732 = vmatprep.subr.bf16.mxu0 %v669
        %733 = vmatpush1.bf16.msra.mxu0 %v668
        %734 = vmatprep.subr.bf16.mxu0 %v671
        %735 = vmatpush1.bf16.msra.mxu0 %v670
        %736 = vmatprep.subr.bf16.mxu0 %v673
        %737 = vmatpush1.bf16.msra.mxu0 %v672
        %738 = vmatprep.subr.bf16.mxu0 %v675
        %739 = vmatpush1.bf16.msra.mxu0 %v674
        %740 = vmatprep.subr.bf16.mxu0 %v677
        %741 = vmatpush1.bf16.msra.mxu0 %v676
        %742 = vmatprep.subr.bf16.mxu0 %v679
        %743 = vmatpush1.bf16.msra.mxu0 %v678
        %744 = vmatprep.subr.bf16.mxu0 %v681
        %745 = vmatpush1.bf16.msra.mxu0 %v680
        %746 = vmatprep.subr.bf16.mxu0 %v683
        %747 = vmatpush1.bf16.msra.mxu0 %v682
        %748 = vmatprep.subr.bf16.mxu0 %v685
        %749 = vmatpush1.bf16.msra.mxu0 %v684
        %750 = vmatprep.subr.bf16.mxu0 %v687
        %751 = vmatpush1.bf16.msra.mxu0 %v686
        %752 = vmatprep.subr.bf16.mxu0 %v689
        %753 = vmatpush1.bf16.msra.mxu0 %v688
        %754 = vmatprep.subr.bf16.mxu0 %v691
        %755 = vmatpush1.bf16.msra.mxu0 %v690
        %756 = vmatprep.subr.bf16.mxu0 %v693
        %757 = vmatpush1.bf16.msra.mxu0 %v692
        %758 = vmatprep.subr.bf16.mxu0 %v695
        %759 = vmatpush1.bf16.msra.mxu0 %v694
        %760 = vmatprep.subr.bf16.mxu0 %v697
        %761 = vmatpush1.bf16.msra.mxu0 %v696
        %762 = vmatprep.mubr.bf16.mxu0 %v555
        %763 = vmatmul.mubr.bf16.gmra.mrb[0].mxu0 %v554
        %v764 = vpop.f32.mrb[0].mxu0
        %v765 = vadd.f32 0.0, %v764
        %v766 = vpop.f32.mrb[0].mxu0
        %v767 = vadd.f32 0.0, %v766
        %v768 = vpop.f32.mrb[0].mxu0
        %v769 = vadd.f32 0.0, %v768
        %v770 = vpop.f32.mrb[0].mxu0
        %v771 = vadd.f32 0.0, %v770
        %772 = vmatprep.mubr.bf16.mxu0 %v557
        %773 = vmatmul.mubr.bf16.gmra.mrb[0].mxu0 %v556
        %v774 = vpop.f32.mrb[0].mxu0
        %v775 = vadd.f32 0.0, %v774
        %v776 = vpop.f32.mrb[0].mxu0
        %v777 = vadd.f32 0.0, %v776
        %v778 = vpop.f32.mrb[0].mxu0
        %v779 = vadd.f32 0.0, %v778
        %v780 = vpop.f32.mrb[0].mxu0
        %v781 = vadd.f32 0.0, %v780
        %782 = vmatprep.mubr.bf16.mxu0 %v559
        %783 = vmatmul.mubr.bf16.gmra.mrb[0].mxu0 %v558
        %v784 = vpop.f32.mrb[0].mxu0
        %v785 = vadd.f32 0.0, %v784
        %v786 = vpop.f32.mrb[0].mxu0
        %v787 = vadd.f32 0.0, %v786
        %v788 = vpop.f32.mrb[0].mxu0
        %v789 = vadd.f32 0.0, %v788
        %v790 = vpop.f32.mrb[0].mxu0
        %v791 = vadd.f32 0.0, %v790
        %792 = vmatprep.mubr.bf16.mxu0 %v561
        %793 = vmatmul.mubr.bf16.gmra.mrb[0].mxu0 %v560
        %v794 = vpop.f32.mrb[0].mxu0
        %v795 = vadd.f32 0.0, %v794
        %v796 = vpop.f32.mrb[0].mxu0
        %v797 = vadd.f32 0.0, %v796
        %v798 = vpop.f32.mrb[0].mxu0
        %v799 = vadd.f32 0.0, %v798
        %v800 = vpop.f32.mrb[0].mxu0
        %v801 = vadd.f32 0.0, %v800
        %802 = vdwg.mxu0
        %v803 = vld [vmem:[#allocation12] sm:$0xff]
        %v804 = vld [vmem:[#allocation12 + $0x8] sm:$0xff]
        %v805 = vld [vmem:[#allocation12 + $0x10] sm:$0xff]
        %v806 = vld [vmem:[#allocation12 + $0x18] sm:$0xff]
        %v807 = vld [vmem:[#allocation12 + $0x20] sm:$0xff]
        %v808 = vld [vmem:[#allocation12 + $0x28] sm:$0xff]
        %v809 = vld [vmem:[#allocation12 + $0x30] sm:$0xff]
        %v810 = vld [vmem:[#allocation12 + $0x38] sm:$0xff]
        %v811 = vld [vmem:[#allocation12 + $0x40] sm:$0xff]
        %v812 = vld [vmem:[#allocation12 + $0x48] sm:$0xff]
        %v813 = vld [vmem:[#allocation12 + $0x50] sm:$0xff]
        %v814 = vld [vmem:[#allocation12 + $0x58] sm:$0xff]
        %v815 = vld [vmem:[#allocation12 + $0x60] sm:$0xff]
        %v816 = vld [vmem:[#allocation12 + $0x68] sm:$0xff]
        %v817 = vld [vmem:[#allocation12 + $0x70] sm:$0xff]
        %v818 = vld [vmem:[#allocation12 + $0x78] sm:$0xff]
        %v819 = vld [vmem:[#allocation12 + $0x80] sm:$0xff]
        %v820 = vld [vmem:[#allocation12 + $0x88] sm:$0xff]
        %v821 = vld [vmem:[#allocation12 + $0x90] sm:$0xff]
        %v822 = vld [vmem:[#allocation12 + $0x98] sm:$0xff]
        %v823 = vld [vmem:[#allocation12 + $0xa0] sm:$0xff]
        %v824 = vld [vmem:[#allocation12 + $0xa8] sm:$0xff]
        %v825 = vld [vmem:[#allocation12 + $0xb0] sm:$0xff]
        %v826 = vld [vmem:[#allocation12 + $0xb8] sm:$0xff]
        %v827 = vld [vmem:[#allocation12 + $0xc0] sm:$0xff]
        %v828 = vld [vmem:[#allocation12 + $0xc8] sm:$0xff]
        %v829 = vld [vmem:[#allocation12 + $0xd0] sm:$0xff]
        %v830 = vld [vmem:[#allocation12 + $0xd8] sm:$0xff]
        %v831 = vld [vmem:[#allocation12 + $0xe0] sm:$0xff]
        %v832 = vld [vmem:[#allocation12 + $0xe8] sm:$0xff]
        %v833 = vld [vmem:[#allocation12 + $0xf0] sm:$0xff]
        %v834 = vld [vmem:[#allocation12 + $0xf8] sm:$0xff]
        %v851 = vunpack.c.l.b16 %v469
        %v852 = vunpack.c.h.b16 %v469
        %v853 = vunpack.c.l.b16 %v470
        %v854 = vunpack.c.h.b16 %v470
        %v855 = vunpack.c.l.b16 %v471
        %v856 = vunpack.c.h.b16 %v471
        %v857 = vunpack.c.l.b16 %v472
        %v858 = vunpack.c.h.b16 %v472
        %v859 = vunpack.c.l.b16 %v473
        %v860 = vunpack.c.h.b16 %v473
        %v861 = vunpack.c.l.b16 %v474
        %v862 = vunpack.c.h.b16 %v474
        %v863 = vunpack.c.l.b16 %v475
        %v864 = vunpack.c.h.b16 %v475
        %v865 = vunpack.c.l.b16 %v476
        %v866 = vunpack.c.h.b16 %v476
        %v867 = vunpack.c.l.b16 %v477
        %v868 = vunpack.c.h.b16 %v477
        %v869 = vunpack.c.l.b16 %v478
        %v870 = vunpack.c.h.b16 %v478
        %v871 = vunpack.c.l.b16 %v479
        %v872 = vunpack.c.h.b16 %v479
        %v873 = vunpack.c.l.b16 %v480
        %v874 = vunpack.c.h.b16 %v480
        %v875 = vunpack.c.l.b16 %v481
        %v876 = vunpack.c.h.b16 %v481
        %v877 = vunpack.c.l.b16 %v482
        %v878 = vunpack.c.h.b16 %v482
        %v879 = vunpack.c.l.b16 %v483
        %v880 = vunpack.c.h.b16 %v483
        %v881 = vunpack.c.l.b16 %v484
        %v882 = vunpack.c.h.b16 %v484
        %v883 = vpack.c.b16 %v853, %v851
        %v884 = vpack.c.b16 %v854, %v852
        %v885 = vpack.c.b16 %v857, %v855
        %v886 = vpack.c.b16 %v858, %v856
        %v887 = vpack.c.b16 %v861, %v859
        %v888 = vpack.c.b16 %v862, %v860
        %v889 = vpack.c.b16 %v865, %v863
        %v890 = vpack.c.b16 %v866, %v864
        %v891 = vpack.c.b16 %v869, %v867
        %v892 = vpack.c.b16 %v870, %v868
        %v893 = vpack.c.b16 %v873, %v871
        %v894 = vpack.c.b16 %v874, %v872
        %v895 = vpack.c.b16 %v877, %v875
        %v896 = vpack.c.b16 %v878, %v876
        %v897 = vpack.c.b16 %v881, %v879
        %v898 = vpack.c.b16 %v882, %v880
        %v947 = vunpack.c.l.b16 %v803
        %v948 = vunpack.c.h.b16 %v803
        %v949 = vunpack.c.l.b16 %v804
        %v950 = vunpack.c.h.b16 %v804
        %v951 = vunpack.c.l.b16 %v805
        %v952 = vunpack.c.h.b16 %v805
        %v953 = vunpack.c.l.b16 %v806
        %v954 = vunpack.c.h.b16 %v806
        %v955 = vunpack.c.l.b16 %v807
        %v956 = vunpack.c.h.b16 %v807
        %v957 = vunpack.c.l.b16 %v808
        %v958 = vunpack.c.h.b16 %v808
        %v959 = vunpack.c.l.b16 %v809
        %v960 = vunpack.c.h.b16 %v809
        %v961 = vunpack.c.l.b16 %v810
        %v962 = vunpack.c.h.b16 %v810
        %v963 = vunpack.c.l.b16 %v811
        %v964 = vunpack.c.h.b16 %v811
        %v965 = vunpack.c.l.b16 %v812
        %v966 = vunpack.c.h.b16 %v812
        %v967 = vunpack.c.l.b16 %v813
        %v968 = vunpack.c.h.b16 %v813
        %v969 = vunpack.c.l.b16 %v814
        %v970 = vunpack.c.h.b16 %v814
        %v971 = vunpack.c.l.b16 %v815
        %v972 = vunpack.c.h.b16 %v815
        %v973 = vunpack.c.l.b16 %v816
        %v974 = vunpack.c.h.b16 %v816
        %v975 = vunpack.c.l.b16 %v817
        %v976 = vunpack.c.h.b16 %v817
        %v977 = vunpack.c.l.b16 %v818
        %v978 = vunpack.c.h.b16 %v818
        %v979 = vunpack.c.l.b16 %v819
        %v980 = vunpack.c.h.b16 %v819
        %v981 = vunpack.c.l.b16 %v820
        %v982 = vunpack.c.h.b16 %v820
        %v983 = vunpack.c.l.b16 %v821
        %v984 = vunpack.c.h.b16 %v821
        %v985 = vunpack.c.l.b16 %v822
        %v986 = vunpack.c.h.b16 %v822
        %v987 = vunpack.c.l.b16 %v823
        %v988 = vunpack.c.h.b16 %v823
        %v989 = vunpack.c.l.b16 %v824
        %v990 = vunpack.c.h.b16 %v824
        %v991 = vunpack.c.l.b16 %v825
        %v992 = vunpack.c.h.b16 %v825
        %v993 = vunpack.c.l.b16 %v826
        %v994 = vunpack.c.h.b16 %v826
        %v995 = vunpack.c.l.b16 %v827
        %v996 = vunpack.c.h.b16 %v827
        %v997 = vunpack.c.l.b16 %v828
        %v998 = vunpack.c.h.b16 %v828
        %v999 = vunpack.c.l.b16 %v829
        %v1000 = vunpack.c.h.b16 %v829
        %v1001 = vunpack.c.l.b16 %v830
        %v1002 = vunpack.c.h.b16 %v830
        %v1003 = vunpack.c.l.b16 %v831
        %v1004 = vunpack.c.h.b16 %v831
        %v1005 = vunpack.c.l.b16 %v832
        %v1006 = vunpack.c.h.b16 %v832
        %v1007 = vunpack.c.l.b16 %v833
        %v1008 = vunpack.c.h.b16 %v833
        %v1009 = vunpack.c.l.b16 %v834
        %v1010 = vunpack.c.h.b16 %v834
        %v1011 = vpack.c.b16 %v949, %v947
        %v1012 = vpack.c.b16 %v950, %v948
        %v1013 = vpack.c.b16 %v953, %v951
        %v1014 = vpack.c.b16 %v954, %v952
        %v1015 = vpack.c.b16 %v957, %v955
        %v1016 = vpack.c.b16 %v958, %v956
        %v1017 = vpack.c.b16 %v961, %v959
        %v1018 = vpack.c.b16 %v962, %v960
        %v1019 = vpack.c.b16 %v965, %v963
        %v1020 = vpack.c.b16 %v966, %v964
        %v1021 = vpack.c.b16 %v969, %v967
        %v1022 = vpack.c.b16 %v970, %v968
        %v1023 = vpack.c.b16 %v973, %v971
        %v1024 = vpack.c.b16 %v974, %v972
        %v1025 = vpack.c.b16 %v977, %v975
        %v1026 = vpack.c.b16 %v978, %v976
        %v1027 = vpack.c.b16 %v981, %v979
        %v1028 = vpack.c.b16 %v982, %v980
        %v1029 = vpack.c.b16 %v985, %v983
        %v1030 = vpack.c.b16 %v986, %v984
        %v1031 = vpack.c.b16 %v989, %v987
        %v1032 = vpack.c.b16 %v990, %v988
        %v1033 = vpack.c.b16 %v993, %v991
        %v1034 = vpack.c.b16 %v994, %v992
        %v1035 = vpack.c.b16 %v997, %v995
        %v1036 = vpack.c.b16 %v998, %v996
        %v1037 = vpack.c.b16 %v1001, %v999
        %v1038 = vpack.c.b16 %v1002, %v1000
        %v1039 = vpack.c.b16 %v1005, %v1003
        %v1040 = vpack.c.b16 %v1006, %v1004
        %v1041 = vpack.c.b16 %v1009, %v1007
        %v1042 = vpack.c.b16 %v1010, %v1008
        %1075 = vmatprep.subr.bf16.mxu0 %v1012
        %1076 = vmatpush1.bf16.msra.mxu0 %v1011
        %1077 = vmatprep.subr.bf16.mxu0 %v1014
        %1078 = vmatpush1.bf16.msra.mxu0 %v1013
        %1079 = vmatprep.subr.bf16.mxu0 %v1016
        %1080 = vmatpush1.bf16.msra.mxu0 %v1015
        %1081 = vmatprep.subr.bf16.mxu0 %v1018
        %1082 = vmatpush1.bf16.msra.mxu0 %v1017
        %1083 = vmatprep.subr.bf16.mxu0 %v1020
        %1084 = vmatpush1.bf16.msra.mxu0 %v1019
        %1085 = vmatprep.subr.bf16.mxu0 %v1022
        %1086 = vmatpush1.bf16.msra.mxu0 %v1021
        %1087 = vmatprep.subr.bf16.mxu0 %v1024
        %1088 = vmatpush1.bf16.msra.mxu0 %v1023
        %1089 = vmatprep.subr.bf16.mxu0 %v1026
        %1090 = vmatpush1.bf16.msra.mxu0 %v1025
        %1091 = vmatprep.subr.bf16.mxu0 %v1028
        %1092 = vmatpush1.bf16.msra.mxu0 %v1027
        %1093 = vmatprep.subr.bf16.mxu0 %v1030
        %1094 = vmatpush1.bf16.msra.mxu0 %v1029
        %1095 = vmatprep.subr.bf16.mxu0 %v1032
        %1096 = vmatpush1.bf16.msra.mxu0 %v1031
        %1097 = vmatprep.subr.bf16.mxu0 %v1034
        %1098 = vmatpush1.bf16.msra.mxu0 %v1033
        %1099 = vmatprep.subr.bf16.mxu0 %v1036
        %1100 = vmatpush1.bf16.msra.mxu0 %v1035
        %1101 = vmatprep.subr.bf16.mxu0 %v1038
        %1102 = vmatpush1.bf16.msra.mxu0 %v1037
        %1103 = vmatprep.subr.bf16.mxu0 %v1040
        %1104 = vmatpush1.bf16.msra.mxu0 %v1039
        %1105 = vmatprep.subr.bf16.mxu0 %v1042
        %1106 = vmatpush1.bf16.msra.mxu0 %v1041
        %1107 = vmatprep.mubr.bf16.mxu0 %v884
        %1108 = vmatmul.mubr.bf16.gmra.mrb[0].mxu0 %v883
        %v1109 = vpop.f32.mrb[0].mxu0
        %v1110 = vadd.f32 0.0, %v1109
        %v1111 = vpop.f32.mrb[0].mxu0
        %v1112 = vadd.f32 0.0, %v1111
        %v1113 = vpop.f32.mrb[0].mxu0
        %v1114 = vadd.f32 0.0, %v1113
        %v1115 = vpop.f32.mrb[0].mxu0
        %v1116 = vadd.f32 0.0, %v1115
        %1117 = vmatprep.mubr.bf16.mxu0 %v886
        %1118 = vmatmul.mubr.bf16.gmra.mrb[0].mxu0 %v885
        %v1119 = vpop.f32.mrb[0].mxu0
        %v1120 = vadd.f32 0.0, %v1119
        %v1121 = vpop.f32.mrb[0].mxu0
        %v1122 = vadd.f32 0.0, %v1121
        %v1123 = vpop.f32.mrb[0].mxu0
        %v1124 = vadd.f32 0.0, %v1123
        %v1125 = vpop.f32.mrb[0].mxu0
        %v1126 = vadd.f32 0.0, %v1125
        %1127 = vmatprep.mubr.bf16.mxu0 %v888
        %1128 = vmatmul.mubr.bf16.gmra.mrb[0].mxu0 %v887
        %v1129 = vpop.f32.mrb[0].mxu0
        %v1130 = vadd.f32 0.0, %v1129
        %v1131 = vpop.f32.mrb[0].mxu0
        %v1132 = vadd.f32 0.0, %v1131
        %v1133 = vpop.f32.mrb[0].mxu0
        %v1134 = vadd.f32 0.0, %v1133
        %v1135 = vpop.f32.mrb[0].mxu0
        %v1136 = vadd.f32 0.0, %v1135
        %1137 = vmatprep.mubr.bf16.mxu0 %v890
        %1138 = vmatmul.mubr.bf16.gmra.mrb[0].mxu0 %v889
        %v1139 = vpop.f32.mrb[0].mxu0
        %v1140 = vadd.f32 0.0, %v1139
        %v1141 = vpop.f32.mrb[0].mxu0
        %v1142 = vadd.f32 0.0, %v1141
        %v1143 = vpop.f32.mrb[0].mxu0
        %v1144 = vadd.f32 0.0, %v1143
        %v1145 = vpop.f32.mrb[0].mxu0
        %v1146 = vadd.f32 0.0, %v1145
        %1147 = vmatprep.mubr.bf16.mxu0 %v892
        %1148 = vmatmul.mubr.bf16.gmra.mrb[0].mxu0 %v891
        %v1149 = vpop.f32.mrb[0].mxu0
        %v1150 = vadd.f32 0.0, %v1149
        %v1151 = vpop.f32.mrb[0].mxu0
        %v1152 = vadd.f32 0.0, %v1151
        %v1153 = vpop.f32.mrb[0].mxu0
        %v1154 = vadd.f32 0.0, %v1153
        %v1155 = vpop.f32.mrb[0].mxu0
        %v1156 = vadd.f32 0.0, %v1155
        %1157 = vmatprep.mubr.bf16.mxu0 %v894
        %1158 = vmatmul.mubr.bf16.gmra.mrb[0].mxu0 %v893
        %v1159 = vpop.f32.mrb[0].mxu0
        %v1160 = vadd.f32 0.0, %v1159
        %v1161 = vpop.f32.mrb[0].mxu0
        %v1162 = vadd.f32 0.0, %v1161
        %v1163 = vpop.f32.mrb[0].mxu0
        %v1164 = vadd.f32 0.0, %v1163
        %v1165 = vpop.f32.mrb[0].mxu0
        %v1166 = vadd.f32 0.0, %v1165
        %1167 = vmatprep.mubr.bf16.mxu0 %v896
        %1168 = vmatmul.mubr.bf16.gmra.mrb[0].mxu0 %v895
        %v1169 = vpop.f32.mrb[0].mxu0
        %v1170 = vadd.f32 0.0, %v1169
        %v1171 = vpop.f32.mrb[0].mxu0
        %v1172 = vadd.f32 0.0, %v1171
        %v1173 = vpop.f32.mrb[0].mxu0
        %v1174 = vadd.f32 0.0, %v1173
        %v1175 = vpop.f32.mrb[0].mxu0
        %v1176 = vadd.f32 0.0, %v1175
        %1177 = vmatprep.mubr.bf16.mxu0 %v898
        %1178 = vmatmul.mubr.bf16.gmra.mrb[0].mxu0 %v897
        %v1179 = vpop.f32.mrb[0].mxu0
        %v1180 = vadd.f32 0.0, %v1179
        %v1181 = vpop.f32.mrb[0].mxu0
        %v1182 = vadd.f32 0.0, %v1181
        %v1183 = vpop.f32.mrb[0].mxu0
        %v1184 = vadd.f32 0.0, %v1183
        %v1185 = vpop.f32.mrb[0].mxu0
        %v1186 = vadd.f32 0.0, %v1185
        %1187 = vdwg.mxu0
        %v1188 = vld [vmem:[#allocation14] sm:$0xff]
        %v1189 = vld [vmem:[#allocation14 + $0x8] sm:$0xff]
        %v1190 = vld [vmem:[#allocation14 + $0x10] sm:$0xff]
        %v1191 = vld [vmem:[#allocation14 + $0x18] sm:$0xff]
        %v1192 = vld [vmem:[#allocation14 + $0x20] sm:$0xff]
        %v1193 = vld [vmem:[#allocation14 + $0x28] sm:$0xff]
        %v1194 = vld [vmem:[#allocation14 + $0x30] sm:$0xff]
        %v1195 = vld [vmem:[#allocation14 + $0x38] sm:$0xff]
        %v1196 = vld [vmem:[#allocation14 + $0x40] sm:$0xff]
        %v1197 = vld [vmem:[#allocation14 + $0x48] sm:$0xff]
        %v1198 = vld [vmem:[#allocation14 + $0x50] sm:$0xff]
        %v1199 = vld [vmem:[#allocation14 + $0x58] sm:$0xff]
        %v1200 = vld [vmem:[#allocation14 + $0x60] sm:$0xff]
        %v1201 = vld [vmem:[#allocation14 + $0x68] sm:$0xff]
        %v1202 = vld [vmem:[#allocation14 + $0x70] sm:$0xff]
        %v1203 = vld [vmem:[#allocation14 + $0x78] sm:$0xff]
        %v1204 = vld [vmem:[#allocation14 + $0x80] sm:$0xff]
        %v1205 = vld [vmem:[#allocation14 + $0x88] sm:$0xff]
        %v1206 = vld [vmem:[#allocation14 + $0x90] sm:$0xff]
        %v1207 = vld [vmem:[#allocation14 + $0x98] sm:$0xff]
        %v1208 = vld [vmem:[#allocation14 + $0xa0] sm:$0xff]
        %v1209 = vld [vmem:[#allocation14 + $0xa8] sm:$0xff]
        %v1210 = vld [vmem:[#allocation14 + $0xb0] sm:$0xff]
        %v1211 = vld [vmem:[#allocation14 + $0xb8] sm:$0xff]
        %v1212 = vld [vmem:[#allocation14 + $0xc0] sm:$0xff]
        %v1213 = vld [vmem:[#allocation14 + $0xc8] sm:$0xff]
        %v1214 = vld [vmem:[#allocation14 + $0xd0] sm:$0xff]
        %v1215 = vld [vmem:[#allocation14 + $0xd8] sm:$0xff]
        %v1216 = vld [vmem:[#allocation14 + $0xe0] sm:$0xff]
        %v1217 = vld [vmem:[#allocation14 + $0xe8] sm:$0xff]
        %v1218 = vld [vmem:[#allocation14 + $0xf0] sm:$0xff]
        %v1219 = vld [vmem:[#allocation14 + $0xf8] sm:$0xff]
        %v1252 = vunpack.c.l.b16 %v1188
        %v1253 = vunpack.c.h.b16 %v1188
        %v1254 = vunpack.c.l.b16 %v1189
        %v1255 = vunpack.c.h.b16 %v1189
        %v1256 = vunpack.c.l.b16 %v1190
        %v1257 = vunpack.c.h.b16 %v1190
        %v1258 = vunpack.c.l.b16 %v1191
        %v1259 = vunpack.c.h.b16 %v1191
        %v1260 = vunpack.c.l.b16 %v1192
        %v1261 = vunpack.c.h.b16 %v1192
        %v1262 = vunpack.c.l.b16 %v1193
        %v1263 = vunpack.c.h.b16 %v1193
        %v1264 = vunpack.c.l.b16 %v1194
        %v1265 = vunpack.c.h.b16 %v1194
        %v1266 = vunpack.c.l.b16 %v1195
        %v1267 = vunpack.c.h.b16 %v1195
        %v1268 = vunpack.c.l.b16 %v1196
        %v1269 = vunpack.c.h.b16 %v1196
        %v1270 = vunpack.c.l.b16 %v1197
        %v1271 = vunpack.c.h.b16 %v1197
        %v1272 = vunpack.c.l.b16 %v1198
        %v1273 = vunpack.c.h.b16 %v1198
        %v1274 = vunpack.c.l.b16 %v1199
        %v1275 = vunpack.c.h.b16 %v1199
        %v1276 = vunpack.c.l.b16 %v1200
        %v1277 = vunpack.c.h.b16 %v1200
        %v1278 = vunpack.c.l.b16 %v1201
        %v1279 = vunpack.c.h.b16 %v1201
        %v1280 = vunpack.c.l.b16 %v1202
        %v1281 = vunpack.c.h.b16 %v1202
        %v1282 = vunpack.c.l.b16 %v1203
        %v1283 = vunpack.c.h.b16 %v1203
        %v1284 = vunpack.c.l.b16 %v1204
        %v1285 = vunpack.c.h.b16 %v1204
        %v1286 = vunpack.c.l.b16 %v1205
        %v1287 = vunpack.c.h.b16 %v1205
        %v1288 = vunpack.c.l.b16 %v1206
        %v1289 = vunpack.c.h.b16 %v1206
        %v1290 = vunpack.c.l.b16 %v1207
        %v1291 = vunpack.c.h.b16 %v1207
        %v1292 = vunpack.c.l.b16 %v1208
        %v1293 = vunpack.c.h.b16 %v1208
        %v1294 = vunpack.c.l.b16 %v1209
        %v1295 = vunpack.c.h.b16 %v1209
        %v1296 = vunpack.c.l.b16 %v1210
        %v1297 = vunpack.c.h.b16 %v1210
        %v1298 = vunpack.c.l.b16 %v1211
        %v1299 = vunpack.c.h.b16 %v1211
        %v1300 = vunpack.c.l.b16 %v1212
        %v1301 = vunpack.c.h.b16 %v1212
        %v1302 = vunpack.c.l.b16 %v1213
        %v1303 = vunpack.c.h.b16 %v1213
        %v1304 = vunpack.c.l.b16 %v1214
        %v1305 = vunpack.c.h.b16 %v1214
        %v1306 = vunpack.c.l.b16 %v1215
        %v1307 = vunpack.c.h.b16 %v1215
        %v1308 = vunpack.c.l.b16 %v1216
        %v1309 = vunpack.c.h.b16 %v1216
        %v1310 = vunpack.c.l.b16 %v1217
        %v1311 = vunpack.c.h.b16 %v1217
        %v1312 = vunpack.c.l.b16 %v1218
        %v1313 = vunpack.c.h.b16 %v1218
        %v1314 = vunpack.c.l.b16 %v1219
        %v1315 = vunpack.c.h.b16 %v1219
        %v1316 = vpack.c.b16 %v1254, %v1252
        %v1317 = vpack.c.b16 %v1255, %v1253
        %v1318 = vpack.c.b16 %v1258, %v1256
        %v1319 = vpack.c.b16 %v1259, %v1257
        %v1320 = vpack.c.b16 %v1262, %v1260
        %v1321 = vpack.c.b16 %v1263, %v1261
        %v1322 = vpack.c.b16 %v1266, %v1264
        %v1323 = vpack.c.b16 %v1267, %v1265
        %v1324 = vpack.c.b16 %v1270, %v1268
        %v1325 = vpack.c.b16 %v1271, %v1269
        %v1326 = vpack.c.b16 %v1274, %v1272
        %v1327 = vpack.c.b16 %v1275, %v1273
        %v1328 = vpack.c.b16 %v1278, %v1276
        %v1329 = vpack.c.b16 %v1279, %v1277
        %v1330 = vpack.c.b16 %v1282, %v1280
        %v1331 = vpack.c.b16 %v1283, %v1281
        %v1332 = vpack.c.b16 %v1286, %v1284
        %v1333 = vpack.c.b16 %v1287, %v1285
        %v1334 = vpack.c.b16 %v1290, %v1288
        %v1335 = vpack.c.b16 %v1291, %v1289
        %v1336 = vpack.c.b16 %v1294, %v1292
        %v1337 = vpack.c.b16 %v1295, %v1293
        %v1338 = vpack.c.b16 %v1298, %v1296
        %v1339 = vpack.c.b16 %v1299, %v1297
        %v1340 = vpack.c.b16 %v1302, %v1300
        %v1341 = vpack.c.b16 %v1303, %v1301
        %v1342 = vpack.c.b16 %v1306, %v1304
        %v1343 = vpack.c.b16 %v1307, %v1305
        %v1344 = vpack.c.b16 %v1310, %v1308
        %v1345 = vpack.c.b16 %v1311, %v1309
        %v1346 = vpack.c.b16 %v1314, %v1312
        %v1347 = vpack.c.b16 %v1315, %v1313
        %1380 = vmatprep.subr.bf16.mxu0 %v1317
        %1381 = vmatpush1.bf16.msra.mxu0 %v1316
        %1382 = vmatprep.subr.bf16.mxu0 %v1319
        %1383 = vmatpush1.bf16.msra.mxu0 %v1318
        %1384 = vmatprep.subr.bf16.mxu0 %v1321
        %1385 = vmatpush1.bf16.msra.mxu0 %v1320
        %1386 = vmatprep.subr.bf16.mxu0 %v1323
        %1387 = vmatpush1.bf16.msra.mxu0 %v1322
        %1388 = vmatprep.subr.bf16.mxu0 %v1325
        %1389 = vmatpush1.bf16.msra.mxu0 %v1324
        %1390 = vmatprep.subr.bf16.mxu0 %v1327
        %1391 = vmatpush1.bf16.msra.mxu0 %v1326
        %1392 = vmatprep.subr.bf16.mxu0 %v1329
        %1393 = vmatpush1.bf16.msra.mxu0 %v1328
        %1394 = vmatprep.subr.bf16.mxu0 %v1331
        %1395 = vmatpush1.bf16.msra.mxu0 %v1330
        %1396 = vmatprep.subr.bf16.mxu0 %v1333
        %1397 = vmatpush1.bf16.msra.mxu0 %v1332
        %1398 = vmatprep.subr.bf16.mxu0 %v1335
        %1399 = vmatpush1.bf16.msra.mxu0 %v1334
        %1400 = vmatprep.subr.bf16.mxu0 %v1337
        %1401 = vmatpush1.bf16.msra.mxu0 %v1336
        %1402 = vmatprep.subr.bf16.mxu0 %v1339
        %1403 = vmatpush1.bf16.msra.mxu0 %v1338
        %1404 = vmatprep.subr.bf16.mxu0 %v1341
        %1405 = vmatpush1.bf16.msra.mxu0 %v1340
        %1406 = vmatprep.subr.bf16.mxu0 %v1343
        %1407 = vmatpush1.bf16.msra.mxu0 %v1342
        %1408 = vmatprep.subr.bf16.mxu0 %v1345
        %1409 = vmatpush1.bf16.msra.mxu0 %v1344
        %1410 = vmatprep.subr.bf16.mxu0 %v1347
        %1411 = vmatpush1.bf16.msra.mxu0 %v1346
        %1412 = vmatprep.mubr.bf16.mxu0 %v884
        %1413 = vmatmul.mubr.bf16.gmra.mrb[0].mxu0 %v883
        %v1414 = vpop.f32.mrb[0].mxu0
        %v1415 = vadd.f32 0.0, %v1414
        %v1416 = vpop.f32.mrb[0].mxu0
        %v1417 = vadd.f32 0.0, %v1416
        %v1418 = vpop.f32.mrb[0].mxu0
        %v1419 = vadd.f32 0.0, %v1418
        %v1420 = vpop.f32.mrb[0].mxu0
        %v1421 = vadd.f32 0.0, %v1420
        %1422 = vmatprep.mubr.bf16.mxu0 %v886
        %1423 = vmatmul.mubr.bf16.gmra.mrb[0].mxu0 %v885
        %v1424 = vpop.f32.mrb[0].mxu0
        %v1425 = vadd.f32 0.0, %v1424
        %v1426 = vpop.f32.mrb[0].mxu0
        %v1427 = vadd.f32 0.0, %v1426
        %v1428 = vpop.f32.mrb[0].mxu0
        %v1429 = vadd.f32 0.0, %v1428
        %v1430 = vpop.f32.mrb[0].mxu0
        %v1431 = vadd.f32 0.0, %v1430
        %1432 = vmatprep.mubr.bf16.mxu0 %v888
        %1433 = vmatmul.mubr.bf16.gmra.mrb[0].mxu0 %v887
        %v1434 = vpop.f32.mrb[0].mxu0
        %v1435 = vadd.f32 0.0, %v1434
        %v1436 = vpop.f32.mrb[0].mxu0
        %v1437 = vadd.f32 0.0, %v1436
        %v1438 = vpop.f32.mrb[0].mxu0
        %v1439 = vadd.f32 0.0, %v1438
        %v1440 = vpop.f32.mrb[0].mxu0
        %v1441 = vadd.f32 0.0, %v1440
        %1442 = vmatprep.mubr.bf16.mxu0 %v890
        %1443 = vmatmul.mubr.bf16.gmra.mrb[0].mxu0 %v889
        %v1444 = vpop.f32.mrb[0].mxu0
        %v1445 = vadd.f32 0.0, %v1444
        %v1446 = vpop.f32.mrb[0].mxu0
        %v1447 = vadd.f32 0.0, %v1446
        %v1448 = vpop.f32.mrb[0].mxu0
        %v1449 = vadd.f32 0.0, %v1448
        %v1450 = vpop.f32.mrb[0].mxu0
        %v1451 = vadd.f32 0.0, %v1450
        %1452 = vmatprep.mubr.bf16.mxu0 %v892
        %1453 = vmatmul.mubr.bf16.gmra.mrb[0].mxu0 %v891
        %v1454 = vpop.f32.mrb[0].mxu0
        %v1455 = vadd.f32 0.0, %v1454
        %v1456 = vpop.f32.mrb[0].mxu0
        %v1457 = vadd.f32 0.0, %v1456
        %v1458 = vpop.f32.mrb[0].mxu0
        %v1459 = vadd.f32 0.0, %v1458
        %v1460 = vpop.f32.mrb[0].mxu0
        %v1461 = vadd.f32 0.0, %v1460
        %1462 = vmatprep.mubr.bf16.mxu0 %v894
        %1463 = vmatmul.mubr.bf16.gmra.mrb[0].mxu0 %v893
        %v1464 = vpop.f32.mrb[0].mxu0
        %v1465 = vadd.f32 0.0, %v1464
        %v1466 = vpop.f32.mrb[0].mxu0
        %v1467 = vadd.f32 0.0, %v1466
        %v1468 = vpop.f32.mrb[0].mxu0
        %v1469 = vadd.f32 0.0, %v1468
        %v1470 = vpop.f32.mrb[0].mxu0
        %v1471 = vadd.f32 0.0, %v1470
        %1472 = vmatprep.mubr.bf16.mxu0 %v896
        %1473 = vmatmul.mubr.bf16.gmra.mrb[0].mxu0 %v895
        %v1474 = vpop.f32.mrb[0].mxu0
        %v1475 = vadd.f32 0.0, %v1474
        %v1476 = vpop.f32.mrb[0].mxu0
        %v1477 = vadd.f32 0.0, %v1476
        %v1478 = vpop.f32.mrb[0].mxu0
        %v1479 = vadd.f32 0.0, %v1478
        %v1480 = vpop.f32.mrb[0].mxu0
        %v1481 = vadd.f32 0.0, %v1480
        %1482 = vmatprep.mubr.bf16.mxu0 %v898
        %1483 = vmatmul.mubr.bf16.gmra.mrb[0].mxu0 %v897
        %v1484 = vpop.f32.mrb[0].mxu0
        %v1485 = vadd.f32 0.0, %v1484
        %v1486 = vpop.f32.mrb[0].mxu0
        %v1487 = vadd.f32 0.0, %v1486
        %v1488 = vpop.f32.mrb[0].mxu0
        %v1489 = vadd.f32 0.0, %v1488
        %v1490 = vpop.f32.mrb[0].mxu0
        %v1491 = vadd.f32 0.0, %v1490
        %1492 = vdwg.mxu0
        %v1493 = vld [vmem:[#allocation6] sm:$0xff]
        %v1494 = vld [vmem:[#allocation6 + $0x8] sm:$0xff]
        %v1495 = vld [vmem:[#allocation6 + $0x10] sm:$0xff]
        %v1496 = vld [vmem:[#allocation6 + $0x18] sm:$0xff]
        %v1497 = vld [vmem:[#allocation6 + $0x20] sm:$0xff]
        %v1498 = vld [vmem:[#allocation6 + $0x28] sm:$0xff]
        %v1499 = vld [vmem:[#allocation6 + $0x30] sm:$0xff]
        %v1500 = vld [vmem:[#allocation6 + $0x38] sm:$0xff]
        %v1501 = vld [vmem:[#allocation6 + $0x40] sm:$0xff]
        %v1502 = vld [vmem:[#allocation6 + $0x48] sm:$0xff]
        %v1503 = vld [vmem:[#allocation6 + $0x50] sm:$0xff]
        %v1504 = vld [vmem:[#allocation6 + $0x58] sm:$0xff]
        %v1505 = vld [vmem:[#allocation6 + $0x60] sm:$0xff]
        %v1506 = vld [vmem:[#allocation6 + $0x68] sm:$0xff]
        %v1507 = vld [vmem:[#allocation6 + $0x70] sm:$0xff]
        %v1508 = vld [vmem:[#allocation6 + $0x78] sm:$0xff]
        %v1509 = vld [vmem:[#allocation8] sm:$0xff]
        %v1510 = vld [vmem:[#allocation8 + $0x8] sm:$0xff]
        %v1511 = vld [vmem:[#allocation8 + $0x10] sm:$0xff]
        %v1512 = vld [vmem:[#allocation8 + $0x18] sm:$0xff]
        %v1513 = vld [vmem:[#allocation8 + $0x20] sm:$0xff]
        %v1514 = vld [vmem:[#allocation8 + $0x28] sm:$0xff]
        %v1515 = vld [vmem:[#allocation8 + $0x30] sm:$0xff]
        %v1516 = vld [vmem:[#allocation8 + $0x38] sm:$0xff]
        %v1517 = vld [vmem:[#allocation8 + $0x40] sm:$0xff]
        %v1518 = vld [vmem:[#allocation8 + $0x48] sm:$0xff]
        %v1519 = vld [vmem:[#allocation8 + $0x50] sm:$0xff]
        %v1520 = vld [vmem:[#allocation8 + $0x58] sm:$0xff]
        %v1521 = vld [vmem:[#allocation8 + $0x60] sm:$0xff]
        %v1522 = vld [vmem:[#allocation8 + $0x68] sm:$0xff]
        %v1523 = vld [vmem:[#allocation8 + $0x70] sm:$0xff]
        %v1524 = vld [vmem:[#allocation8 + $0x78] sm:$0xff]
        %s1525 = scalar_lea.vmem [#allocation6], %s468
        %v1526 = vld [vmem:[%s1525] sm:$0xff]
        %v1527 = vld [vmem:[%s1525 + $0x8] sm:$0xff]
        %v1528 = vld [vmem:[%s1525 + $0x10] sm:$0xff]
        %v1529 = vld [vmem:[%s1525 + $0x18] sm:$0xff]
        %v1530 = vld [vmem:[%s1525 + $0x20] sm:$0xff]
        %v1531 = vld [vmem:[%s1525 + $0x28] sm:$0xff]
        %v1532 = vld [vmem:[%s1525 + $0x30] sm:$0xff]
        %v1533 = vld [vmem:[%s1525 + $0x38] sm:$0xff]
        %s1534 = scalar_lea.vmem [#allocation8], %s468
        %v1535 = vld [vmem:[%s1534] sm:$0xff]
        %v1536 = vld [vmem:[%s1534 + $0x8] sm:$0xff]
        %v1537 = vld [vmem:[%s1534 + $0x10] sm:$0xff]
        %v1538 = vld [vmem:[%s1534 + $0x18] sm:$0xff]
        %v1539 = vld [vmem:[%s1534 + $0x20] sm:$0xff]
        %v1540 = vld [vmem:[%s1534 + $0x28] sm:$0xff]
        %v1541 = vld [vmem:[%s1534 + $0x30] sm:$0xff]
        %v1542 = vld [vmem:[%s1534 + $0x38] sm:$0xff]
        %v1543 = vld [vmem:[%s411] sm:$0xff]
        %v1544 = vld [vmem:[%s411 + $0x8] sm:$0xff]
        %v1545 = vld [vmem:[%s411 + $0x10] sm:$0xff]
        %v1546 = vld [vmem:[%s411 + $0x18] sm:$0xff]
        %v1547 = vld [vmem:[%s411 + $0x20] sm:$0xff]
        %v1548 = vld [vmem:[%s411 + $0x28] sm:$0xff]
        %v1549 = vld [vmem:[%s411 + $0x30] sm:$0xff]
        %v1550 = vld [vmem:[%s411 + $0x38] sm:$0xff]
        %v1551 = vmul.f32 %v765, %v1526
        %v1552 = vmul.f32 %v769, %v1527
        %v1553 = vmul.f32 %v775, %v1528
        %v1554 = vmul.f32 %v779, %v1529
        %v1555 = vmul.f32 %v785, %v1530
        %v1556 = vmul.f32 %v789, %v1531
        %v1557 = vmul.f32 %v795, %v1532
        %v1558 = vmul.f32 %v799, %v1533
        %1559 = vrot.lane.b32.xlu0 %v765, 64
        %v1560 = vpop.permute.xlu0 %1559
        %1561 = vrot.lane.b32.xlu0 %v769, 64
        %v1562 = vpop.permute.xlu0 %1561
        %1563 = vrot.lane.b32.xlu0 %v775, 64
        %v1564 = vpop.permute.xlu0 %1563
        %1565 = vrot.lane.b32.xlu0 %v779, 64
        %v1566 = vpop.permute.xlu0 %1565
        %1567 = vrot.lane.b32.xlu0 %v785, 64
        %v1568 = vpop.permute.xlu0 %1567
        %1569 = vrot.lane.b32.xlu0 %v789, 64
        %v1570 = vpop.permute.xlu0 %1569
        %1571 = vrot.lane.b32.xlu0 %v795, 64
        %v1572 = vpop.permute.xlu0 %1571
        %1573 = vrot.lane.b32.xlu0 %v799, 64
        %v1574 = vpop.permute.xlu0 %1573
        %v1575 = vmul.f32 %v1560, %v1535
        %v1576 = vmul.f32 %v1562, %v1536
        %v1577 = vmul.f32 %v1564, %v1537
        %v1578 = vmul.f32 %v1566, %v1538
        %v1579 = vmul.f32 %v1568, %v1539
        %v1580 = vmul.f32 %v1570, %v1540
        %v1581 = vmul.f32 %v1572, %v1541
        %v1582 = vmul.f32 %v1574, %v1542
        %v1583 = vadd.f32 %v1551, %v1575
        %v1584 = vadd.f32 %v1552, %v1576
        %v1585 = vadd.f32 %v1553, %v1577
        %v1586 = vadd.f32 %v1554, %v1578
        %v1587 = vadd.f32 %v1555, %v1579
        %v1588 = vadd.f32 %v1556, %v1580
        %v1589 = vadd.f32 %v1557, %v1581
        %v1590 = vadd.f32 %v1558, %v1582
        %v1591 = vmul.f32 %v1110, %v1493
        %v1592 = vmul.f32 %v1114, %v1494
        %v1593 = vmul.f32 %v1120, %v1495
        %v1594 = vmul.f32 %v1124, %v1496
        %v1595 = vmul.f32 %v1130, %v1497
        %v1596 = vmul.f32 %v1134, %v1498
        %v1597 = vmul.f32 %v1140, %v1499
        %v1598 = vmul.f32 %v1144, %v1500
        %v1599 = vmul.f32 %v1150, %v1501
        %v1600 = vmul.f32 %v1154, %v1502
        %v1601 = vmul.f32 %v1160, %v1503
        %v1602 = vmul.f32 %v1164, %v1504
        %v1603 = vmul.f32 %v1170, %v1505
        %v1604 = vmul.f32 %v1174, %v1506
        %v1605 = vmul.f32 %v1180, %v1507
        %v1606 = vmul.f32 %v1184, %v1508
        %1607 = vrot.lane.b32.xlu0 %v1110, 64
        %v1608 = vpop.permute.xlu0 %1607
        %1609 = vrot.lane.b32.xlu0 %v1114, 64
        %v1610 = vpop.permute.xlu0 %1609
        %1611 = vrot.lane.b32.xlu0 %v1120, 64
        %v1612 = vpop.permute.xlu0 %1611
        %1613 = vrot.lane.b32.xlu0 %v1124, 64
        %v1614 = vpop.permute.xlu0 %1613
        %1615 = vrot.lane.b32.xlu0 %v1130, 64
        %v1616 = vpop.permute.xlu0 %1615
        %1617 = vrot.lane.b32.xlu0 %v1134, 64
        %v1618 = vpop.permute.xlu0 %1617
        %1619 = vrot.lane.b32.xlu0 %v1140, 64
        %v1620 = vpop.permute.xlu0 %1619
        %1621 = vrot.lane.b32.xlu0 %v1144, 64
        %v1622 = vpop.permute.xlu0 %1621
        %1623 = vrot.lane.b32.xlu0 %v1150, 64
        %v1624 = vpop.permute.xlu0 %1623
        %1625 = vrot.lane.b32.xlu0 %v1154, 64
        %v1626 = vpop.permute.xlu0 %1625
        %1627 = vrot.lane.b32.xlu0 %v1160, 64
        %v1628 = vpop.permute.xlu0 %1627
        %1629 = vrot.lane.b32.xlu0 %v1164, 64
        %v1630 = vpop.permute.xlu0 %1629
        %1631 = vrot.lane.b32.xlu0 %v1170, 64
        %v1632 = vpop.permute.xlu0 %1631
        %1633 = vrot.lane.b32.xlu0 %v1174, 64
        %v1634 = vpop.permute.xlu0 %1633
        %1635 = vrot.lane.b32.xlu0 %v1180, 64
        %v1636 = vpop.permute.xlu0 %1635
        %1637 = vrot.lane.b32.xlu0 %v1184, 64
        %v1638 = vpop.permute.xlu0 %1637
        %v1639 = vmul.f32 %v1608, %v1509
        %v1640 = vmul.f32 %v1610, %v1510
        %v1641 = vmul.f32 %v1612, %v1511
        %v1642 = vmul.f32 %v1614, %v1512
        %v1643 = vmul.f32 %v1616, %v1513
        %v1644 = vmul.f32 %v1618, %v1514
        %v1645 = vmul.f32 %v1620, %v1515
        %v1646 = vmul.f32 %v1622, %v1516
        %v1647 = vmul.f32 %v1624, %v1517
        %v1648 = vmul.f32 %v1626, %v1518
        %v1649 = vmul.f32 %v1628, %v1519
        %v1650 = vmul.f32 %v1630, %v1520
        %v1651 = vmul.f32 %v1632, %v1521
        %v1652 = vmul.f32 %v1634, %v1522
        %v1653 = vmul.f32 %v1636, %v1523
        %v1654 = vmul.f32 %v1638, %v1524
        %v1655 = vadd.f32 %v1591, %v1639
        %v1656 = vadd.f32 %v1592, %v1640
        %v1657 = vadd.f32 %v1593, %v1641
        %v1658 = vadd.f32 %v1594, %v1642
        %v1659 = vadd.f32 %v1595, %v1643
        %v1660 = vadd.f32 %v1596, %v1644
        %v1661 = vadd.f32 %v1597, %v1645
        %v1662 = vadd.f32 %v1598, %v1646
        %v1663 = vadd.f32 %v1599, %v1647
        %v1664 = vadd.f32 %v1600, %v1648
        %v1665 = vadd.f32 %v1601, %v1649
        %v1666 = vadd.f32 %v1602, %v1650
        %v1667 = vadd.f32 %v1603, %v1651
        %v1668 = vadd.f32 %v1604, %v1652
        %v1669 = vadd.f32 %v1605, %v1653
        %v1670 = vadd.f32 %v1606, %v1654
        %v1671 = vpack.c.bf16 %v1584, %v1583
        %v1672 = vpack.c.bf16 %v1586, %v1585
        %v1673 = vpack.c.bf16 %v1588, %v1587
        %v1674 = vpack.c.bf16 %v1590, %v1589
        %v1675 = vpack.c.bf16 %v1656, %v1655
        %v1676 = vpack.c.bf16 %v1658, %v1657
        %v1677 = vpack.c.bf16 %v1660, %v1659
        %v1678 = vpack.c.bf16 %v1662, %v1661
        %v1679 = vpack.c.bf16 %v1664, %v1663
        %v1680 = vpack.c.bf16 %v1666, %v1665
        %v1681 = vpack.c.bf16 %v1668, %v1667
        %v1682 = vpack.c.bf16 %v1670, %v1669
        %1683 = vmatprep.subr.bf16.mxu0 0
        %1684 = vmatpush1.bf16.xpose.msra.mxu0 %v1675
        %1685 = vmatprep.subr.bf16.mxu0 0
        %1686 = vmatpush1.bf16.xpose.msra.mxu0 %v1676
        %1687 = vmatprep.subr.bf16.mxu0 0
        %1688 = vmatpush1.bf16.xpose.msra.mxu0 %v1677
        %1689 = vmatprep.subr.bf16.mxu0 0
        %1690 = vmatpush1.bf16.xpose.msra.mxu0 %v1678
        %1691 = vmatprep.subr.bf16.mxu0 0
        %1692 = vmatpush1.bf16.xpose.msra.mxu0 %v1679
        %1693 = vmatprep.subr.bf16.mxu0 0
        %1694 = vmatpush1.bf16.xpose.msra.mxu0 %v1680
        %1695 = vmatprep.subr.bf16.mxu0 0
        %1696 = vmatpush1.bf16.xpose.msra.mxu0 %v1681
        %1697 = vmatprep.subr.bf16.mxu0 0
        %1698 = vmatpush1.bf16.xpose.msra.mxu0 %v1682
        %1699 = vmatprep.subr.bf16.mxu0 0
        %1700 = vmatpush1.bf16.xpose.msra.mxu0 0
        %1701 = vmatprep.subr.bf16.mxu0 0
        %1702 = vmatpush1.bf16.xpose.msra.mxu0 0
        %1703 = vmatprep.subr.bf16.mxu0 0
        %1704 = vmatpush1.bf16.xpose.msra.mxu0 0
        %1705 = vmatprep.subr.bf16.mxu0 0
        %1706 = vmatpush1.bf16.xpose.msra.mxu0 0
        %1707 = vmatprep.subr.bf16.mxu0 0
        %1708 = vmatpush1.bf16.xpose.msra.mxu0 0
        %1709 = vmatprep.subr.bf16.mxu0 0
        %1710 = vmatpush1.bf16.xpose.msra.mxu0 0
        %1711 = vmatprep.subr.bf16.mxu0 0
        %1712 = vmatpush1.bf16.xpose.msra.mxu0 0
        %1713 = vmatprep.subr.bf16.mxu0 0
        %1714 = vmatpush1.bf16.xpose.msra.mxu0 0
        %1715 = vmatprep.mubr.bf16.mxu0 0
        %1716 = vmatmul.mubr.bf16.gmra.mrb[0].mxu0 %v1671
        %v1717 = vpop.f32.mrb[0].mxu0
        %v1718 = vadd.f32 %v1543, %v1717
        %v1719 = vpop.f32.mrb[0].mxu0
        %v1720 = vpop.f32.mrb[0].mxu0
        %v1721 = vadd.f32 %v1544, %v1720
        %v1722 = vpop.f32.mrb[0].mxu0
        %1723 = vmatprep.mubr.bf16.mxu0 0
        %1724 = vmatmul.mubr.bf16.gmra.mrb[0].mxu0 %v1672
        %v1725 = vpop.f32.mrb[0].mxu0
        %v1726 = vadd.f32 %v1545, %v1725
        %v1727 = vpop.f32.mrb[0].mxu0
        %v1728 = vpop.f32.mrb[0].mxu0
        %v1729 = vadd.f32 %v1546, %v1728
        %v1730 = vpop.f32.mrb[0].mxu0
        %1731 = vmatprep.mubr.bf16.mxu0 0
        %1732 = vmatmul.mubr.bf16.gmra.mrb[0].mxu0 %v1673
        %v1733 = vpop.f32.mrb[0].mxu0
        %v1734 = vadd.f32 %v1547, %v1733
        %v1735 = vpop.f32.mrb[0].mxu0
        %v1736 = vpop.f32.mrb[0].mxu0
        %v1737 = vadd.f32 %v1548, %v1736
        %v1738 = vpop.f32.mrb[0].mxu0
        %1739 = vmatprep.mubr.bf16.mxu0 0
        %1740 = vmatmul.mubr.bf16.gmra.mrb[0].mxu0 %v1674
        %v1741 = vpop.f32.mrb[0].mxu0
        %v1742 = vadd.f32 %v1549, %v1741
        %v1743 = vpop.f32.mrb[0].mxu0
        %v1744 = vpop.f32.mrb[0].mxu0
        %v1745 = vadd.f32 %v1550, %v1744
        %v1746 = vpop.f32.mrb[0].mxu0
        %1747 = vdwg.mxu0
        %1748 = vmax.xlane.f32.xlu0 %v1718
        %v1749 = vpop.xlane.xlu0 %1748
        %1750 = vmax.xlane.f32.xlu0 %v1721
        %v1751 = vpop.xlane.xlu0 %1750
        %1752 = vmax.xlane.f32.xlu0 %v1726
        %v1753 = vpop.xlane.xlu0 %1752
        %1754 = vmax.xlane.f32.xlu0 %v1729
        %v1755 = vpop.xlane.xlu0 %1754
        %1756 = vmax.xlane.f32.xlu0 %v1734
        %v1757 = vpop.xlane.xlu0 %1756
        %1758 = vmax.xlane.f32.xlu0 %v1737
        %v1759 = vpop.xlane.xlu0 %1758
        %1760 = vmax.xlane.f32.xlu0 %v1742
        %v1761 = vpop.xlane.xlu0 %1760
        %1762 = vmax.xlane.f32.xlu0 %v1745
        %v1763 = vpop.xlane.xlu0 %1762
        %v1764 = vsub.f32 %v1718, %v1749
        %v1765 = vsub.f32 %v1721, %v1751
        %v1766 = vsub.f32 %v1726, %v1753
        %v1767 = vsub.f32 %v1729, %v1755
        %v1768 = vsub.f32 %v1734, %v1757
        %v1769 = vsub.f32 %v1737, %v1759
        %v1770 = vsub.f32 %v1742, %v1761
        %v1771 = vsub.f32 %v1745, %v1763
        %v1772 = vmul.f32 %v1764, 1.442695
        %v1773 = vpow.pop %v1772
        %v1774 = vmul.f32 %v1765, 1.442695
        %v1775 = vpow.pop %v1774
        %v1776 = vmul.f32 %v1766, 1.442695
        %v1777 = vpow.pop %v1776
        %v1778 = vmul.f32 %v1767, 1.442695
        %v1779 = vpow.pop %v1778
        %v1780 = vmul.f32 %v1768, 1.442695
        %v1781 = vpow.pop %v1780
        %v1782 = vmul.f32 %v1769, 1.442695
        %v1783 = vpow.pop %v1782
        %v1784 = vmul.f32 %v1770, 1.442695
        %v1785 = vpow.pop %v1784
        %v1786 = vmul.f32 %v1771, 1.442695
        %v1787 = vpow.pop %v1786
        %1788 = vadd.xlane.f32.xlu0 %v1773
        %v1789 = vpop.xlane.xlu0 %1788
        %1790 = vadd.xlane.f32.xlu0 %v1775
        %v1791 = vpop.xlane.xlu0 %1790
        %1792 = vadd.xlane.f32.xlu0 %v1777
        %v1793 = vpop.xlane.xlu0 %1792
        %1794 = vadd.xlane.f32.xlu0 %v1779
        %v1795 = vpop.xlane.xlu0 %1794
        %1796 = vadd.xlane.f32.xlu0 %v1781
        %v1797 = vpop.xlane.xlu0 %1796
        %1798 = vadd.xlane.f32.xlu0 %v1783
        %v1799 = vpop.xlane.xlu0 %1798
        %1800 = vadd.xlane.f32.xlu0 %v1785
        %v1801 = vpop.xlane.xlu0 %1800
        %1802 = vadd.xlane.f32.xlu0 %v1787
        %v1803 = vpop.xlane.xlu0 %1802
        %v1804 = vmax.f32 %v1789, 1e-30
        %v1805 = vmax.f32 %v1791, 1e-30
        %v1806 = vmax.f32 %v1793, 1e-30
        %v1807 = vmax.f32 %v1795, 1e-30
        %v1808 = vmax.f32 %v1797, 1e-30
        %v1809 = vmax.f32 %v1799, 1e-30
        %v1810 = vmax.f32 %v1801, 1e-30
        %v1811 = vmax.f32 %v1803, 1e-30
        %v1812 = vpack.c.bf16 %v1775, %v1773
        %v1813 = vpack.c.bf16 %v1779, %v1777
        %v1814 = vpack.c.bf16 %v1783, %v1781
        %v1815 = vpack.c.bf16 %v1787, %v1785
        %v1816 = vpack.c.bf16 %v1419, %v1415
        %v1817 = vpack.c.bf16 %v1429, %v1425
        %v1818 = vpack.c.bf16 %v1439, %v1435
        %v1819 = vpack.c.bf16 %v1449, %v1445
        %v1820 = vpack.c.bf16 %v1459, %v1455
        %v1821 = vpack.c.bf16 %v1469, %v1465
        %v1822 = vpack.c.bf16 %v1479, %v1475
        %v1823 = vpack.c.bf16 %v1489, %v1485
        %1824 = vmatprep.subr.bf16.mxu0 0
        %1825 = vmatpush1.bf16.msra.mxu0 %v1816
        %1826 = vmatprep.subr.bf16.mxu0 0
        %1827 = vmatpush1.bf16.msra.mxu0 %v1817
        %1828 = vmatprep.subr.bf16.mxu0 0
        %1829 = vmatpush1.bf16.msra.mxu0 %v1818
        %1830 = vmatprep.subr.bf16.mxu0 0
        %1831 = vmatpush1.bf16.msra.mxu0 %v1819
        %1832 = vmatprep.subr.bf16.mxu0 0
        %1833 = vmatpush1.bf16.msra.mxu0 %v1820
        %1834 = vmatprep.subr.bf16.mxu0 0
        %1835 = vmatpush1.bf16.msra.mxu0 %v1821
        %1836 = vmatprep.subr.bf16.mxu0 0
        %1837 = vmatpush1.bf16.msra.mxu0 %v1822
        %1838 = vmatprep.subr.bf16.mxu0 0
        %1839 = vmatpush1.bf16.msra.mxu0 %v1823
        %1840 = vmatprep.subr.bf16.mxu0 0
        %1841 = vmatpush1.bf16.msra.mxu0 0
        %1842 = vmatprep.subr.bf16.mxu0 0
        %1843 = vmatpush1.bf16.msra.mxu0 0
        %1844 = vmatprep.subr.bf16.mxu0 0
        %1845 = vmatpush1.bf16.msra.mxu0 0
        %1846 = vmatprep.subr.bf16.mxu0 0
        %1847 = vmatpush1.bf16.msra.mxu0 0
        %1848 = vmatprep.subr.bf16.mxu0 0
        %1849 = vmatpush1.bf16.msra.mxu0 0
        %1850 = vmatprep.subr.bf16.mxu0 0
        %1851 = vmatpush1.bf16.msra.mxu0 0
        %1852 = vmatprep.subr.bf16.mxu0 0
        %1853 = vmatpush1.bf16.msra.mxu0 0
        %1854 = vmatprep.subr.bf16.mxu0 0
        %1855 = vmatpush1.bf16.msra.mxu0 0
        %1856 = vmatprep.mubr.bf16.mxu0 0
        %1857 = vmatmul.mubr.bf16.gmra.mrb[0].mxu0 %v1812
        %v1858 = vpop.f32.mrb[0].mxu0
        %v1859 = vadd.f32 0.0, %v1858
        %v1860 = vpop.f32.mrb[0].mxu0
        %v1861 = vpop.f32.mrb[0].mxu0
        %v1862 = vadd.f32 0.0, %v1861
        %v1863 = vpop.f32.mrb[0].mxu0
        %1864 = vmatprep.mubr.bf16.mxu0 0
        %1865 = vmatmul.mubr.bf16.gmra.mrb[0].mxu0 %v1813
        %v1866 = vpop.f32.mrb[0].mxu0
        %v1867 = vadd.f32 0.0, %v1866
        %v1868 = vpop.f32.mrb[0].mxu0
        %v1869 = vpop.f32.mrb[0].mxu0
        %v1870 = vadd.f32 0.0, %v1869
        %v1871 = vpop.f32.mrb[0].mxu0
        %1872 = vmatprep.mubr.bf16.mxu0 0
        %1873 = vmatmul.mubr.bf16.gmra.mrb[0].mxu0 %v1814
        %v1874 = vpop.f32.mrb[0].mxu0
        %v1875 = vadd.f32 0.0, %v1874
        %v1876 = vpop.f32.mrb[0].mxu0
        %v1877 = vpop.f32.mrb[0].mxu0
        %v1878 = vadd.f32 0.0, %v1877
        %v1879 = vpop.f32.mrb[0].mxu0
        %1880 = vmatprep.mubr.bf16.mxu0 0
        %1881 = vmatmul.mubr.bf16.gmra.mrb[0].mxu0 %v1815
        %v1882 = vpop.f32.mrb[0].mxu0
        %v1883 = vadd.f32 0.0, %v1882
        %v1884 = vpop.f32.mrb[0].mxu0
        %v1885 = vpop.f32.mrb[0].mxu0
        %v1886 = vadd.f32 0.0, %v1885
        %v1887 = vpop.f32.mrb[0].mxu0
        %1888 = vdwg.mxu0
        %v1889 = vrcp.pop %v1804
        %v1890 = vrcp.pop %v1805
        %v1891 = vrcp.pop %v1806
        %v1892 = vrcp.pop %v1807
        %v1893 = vrcp.pop %v1808
        %v1894 = vrcp.pop %v1809
        %v1895 = vrcp.pop %v1810
        %v1896 = vrcp.pop %v1811
        %v1897 = vmul.f32 %v1859, %v1889
        %v1898 = vmul.f32 %v1862, %v1890
        %v1899 = vmul.f32 %v1867, %v1891
        %v1900 = vmul.f32 %v1870, %v1892
        %v1901 = vmul.f32 %v1875, %v1893
        %v1902 = vmul.f32 %v1878, %v1894
        %v1903 = vmul.f32 %v1883, %v1895
        %v1904 = vmul.f32 %v1886, %v1896
        %1905 = vst [vmem:[#allocation2] sm:$0xff] %v1897
        %1906 = vst [vmem:[#allocation2 + $0x10] sm:$0xff] %v1898
        %1907 = vst [vmem:[#allocation2 + $0x20] sm:$0xff] %v1899
        %1908 = vst [vmem:[#allocation2 + $0x30] sm:$0xff] %v1900
        %1909 = vst [vmem:[#allocation2 + $0x40] sm:$0xff] %v1901
        %1910 = vst [vmem:[#allocation2 + $0x50] sm:$0xff] %v1902
        %1911 = vst [vmem:[#allocation2 + $0x60] sm:$0xff] %v1903
        %1912 = vst [vmem:[#allocation2 + $0x70] sm:$0xff] %v1904
        %v1913 = vmul.f32 %v767, %v1526
        %v1914 = vmul.f32 %v771, %v1527
        %v1915 = vmul.f32 %v777, %v1528
        %v1916 = vmul.f32 %v781, %v1529
        %v1917 = vmul.f32 %v787, %v1530
        %v1918 = vmul.f32 %v791, %v1531
        %v1919 = vmul.f32 %v797, %v1532
        %v1920 = vmul.f32 %v801, %v1533
        %1921 = vrot.lane.b32.xlu0 %v767, 64
        %v1922 = vpop.permute.xlu0 %1921
        %1923 = vrot.lane.b32.xlu0 %v771, 64
        %v1924 = vpop.permute.xlu0 %1923
        %1925 = vrot.lane.b32.xlu0 %v777, 64
        %v1926 = vpop.permute.xlu0 %1925
        %1927 = vrot.lane.b32.xlu0 %v781, 64
        %v1928 = vpop.permute.xlu0 %1927
        %1929 = vrot.lane.b32.xlu0 %v787, 64
        %v1930 = vpop.permute.xlu0 %1929
        %1931 = vrot.lane.b32.xlu0 %v791, 64
        %v1932 = vpop.permute.xlu0 %1931
        %1933 = vrot.lane.b32.xlu0 %v797, 64
        %v1934 = vpop.permute.xlu0 %1933
        %1935 = vrot.lane.b32.xlu0 %v801, 64
        %v1936 = vpop.permute.xlu0 %1935
        %v1937 = vmul.f32 %v1922, %v1535
        %v1938 = vmul.f32 %v1924, %v1536
        %v1939 = vmul.f32 %v1926, %v1537
        %v1940 = vmul.f32 %v1928, %v1538
        %v1941 = vmul.f32 %v1930, %v1539
        %v1942 = vmul.f32 %v1932, %v1540
        %v1943 = vmul.f32 %v1934, %v1541
        %v1944 = vmul.f32 %v1936, %v1542
        %v1945 = vadd.f32 %v1913, %v1937
        %v1946 = vadd.f32 %v1914, %v1938
        %v1947 = vadd.f32 %v1915, %v1939
        %v1948 = vadd.f32 %v1916, %v1940
        %v1949 = vadd.f32 %v1917, %v1941
        %v1950 = vadd.f32 %v1918, %v1942
        %v1951 = vadd.f32 %v1919, %v1943
        %v1952 = vadd.f32 %v1920, %v1944
        %v1953 = vmul.f32 %v1112, %v1493
        %v1954 = vmul.f32 %v1116, %v1494
        %v1955 = vmul.f32 %v1122, %v1495
        %v1956 = vmul.f32 %v1126, %v1496
        %v1957 = vmul.f32 %v1132, %v1497
        %v1958 = vmul.f32 %v1136, %v1498
        %v1959 = vmul.f32 %v1142, %v1499
        %v1960 = vmul.f32 %v1146, %v1500
        %v1961 = vmul.f32 %v1152, %v1501
        %v1962 = vmul.f32 %v1156, %v1502
        %v1963 = vmul.f32 %v1162, %v1503
        %v1964 = vmul.f32 %v1166, %v1504
        %v1965 = vmul.f32 %v1172, %v1505
        %v1966 = vmul.f32 %v1176, %v1506
        %v1967 = vmul.f32 %v1182, %v1507
        %v1968 = vmul.f32 %v1186, %v1508
        %1969 = vrot.lane.b32.xlu0 %v1112, 64
        %v1970 = vpop.permute.xlu0 %1969
        %1971 = vrot.lane.b32.xlu0 %v1116, 64
        %v1972 = vpop.permute.xlu0 %1971
        %1973 = vrot.lane.b32.xlu0 %v1122, 64
        %v1974 = vpop.permute.xlu0 %1973
        %1975 = vrot.lane.b32.xlu0 %v1126, 64
        %v1976 = vpop.permute.xlu0 %1975
        %1977 = vrot.lane.b32.xlu0 %v1132, 64
        %v1978 = vpop.permute.xlu0 %1977
        %1979 = vrot.lane.b32.xlu0 %v1136, 64
        %v1980 = vpop.permute.xlu0 %1979
        %1981 = vrot.lane.b32.xlu0 %v1142, 64
        %v1982 = vpop.permute.xlu0 %1981
        %1983 = vrot.lane.b32.xlu0 %v1146, 64
        %v1984 = vpop.permute.xlu0 %1983
        %1985 = vrot.lane.b32.xlu0 %v1152, 64
        %v1986 = vpop.permute.xlu0 %1985
        %1987 = vrot.lane.b32.xlu0 %v1156, 64
        %v1988 = vpop.permute.xlu0 %1987
        %1989 = vrot.lane.b32.xlu0 %v1162, 64
        %v1990 = vpop.permute.xlu0 %1989
        %1991 = vrot.lane.b32.xlu0 %v1166, 64
        %v1992 = vpop.permute.xlu0 %1991
        %1993 = vrot.lane.b32.xlu0 %v1172, 64
        %v1994 = vpop.permute.xlu0 %1993
        %1995 = vrot.lane.b32.xlu0 %v1176, 64
        %v1996 = vpop.permute.xlu0 %1995
        %1997 = vrot.lane.b32.xlu0 %v1182, 64
        %v1998 = vpop.permute.xlu0 %1997
        %1999 = vrot.lane.b32.xlu0 %v1186, 64
        %v2000 = vpop.permute.xlu0 %1999
        %v2001 = vmul.f32 %v1970, %v1509
        %v2002 = vmul.f32 %v1972, %v1510
        %v2003 = vmul.f32 %v1974, %v1511
        %v2004 = vmul.f32 %v1976, %v1512
        %v2005 = vmul.f32 %v1978, %v1513
        %v2006 = vmul.f32 %v1980, %v1514
        %v2007 = vmul.f32 %v1982, %v1515
        %v2008 = vmul.f32 %v1984, %v1516
        %v2009 = vmul.f32 %v1986, %v1517
        %v2010 = vmul.f32 %v1988, %v1518
        %v2011 = vmul.f32 %v1990, %v1519
        %v2012 = vmul.f32 %v1992, %v1520
        %v2013 = vmul.f32 %v1994, %v1521
        %v2014 = vmul.f32 %v1996, %v1522
        %v2015 = vmul.f32 %v1998, %v1523
        %v2016 = vmul.f32 %v2000, %v1524
        %v2017 = vadd.f32 %v1953, %v2001
        %v2018 = vadd.f32 %v1954, %v2002
        %v2019 = vadd.f32 %v1955, %v2003
        %v2020 = vadd.f32 %v1956, %v2004
        %v2021 = vadd.f32 %v1957, %v2005
        %v2022 = vadd.f32 %v1958, %v2006
        %v2023 = vadd.f32 %v1959, %v2007
        %v2024 = vadd.f32 %v1960, %v2008
        %v2025 = vadd.f32 %v1961, %v2009
        %v2026 = vadd.f32 %v1962, %v2010
        %v2027 = vadd.f32 %v1963, %v2011
        %v2028 = vadd.f32 %v1964, %v2012
        %v2029 = vadd.f32 %v1965, %v2013
        %v2030 = vadd.f32 %v1966, %v2014
        %v2031 = vadd.f32 %v1967, %v2015
        %v2032 = vadd.f32 %v1968, %v2016
        %v2033 = vpack.c.bf16 %v1946, %v1945
        %v2034 = vpack.c.bf16 %v1948, %v1947
        %v2035 = vpack.c.bf16 %v1950, %v1949
        %v2036 = vpack.c.bf16 %v1952, %v1951
        %v2037 = vpack.c.bf16 %v2018, %v2017
        %v2038 = vpack.c.bf16 %v2020, %v2019
        %v2039 = vpack.c.bf16 %v2022, %v2021
        %v2040 = vpack.c.bf16 %v2024, %v2023
        %v2041 = vpack.c.bf16 %v2026, %v2025
        %v2042 = vpack.c.bf16 %v2028, %v2027
        %v2043 = vpack.c.bf16 %v2030, %v2029
        %v2044 = vpack.c.bf16 %v2032, %v2031
        %2045 = vmatprep.subr.bf16.mxu0 0
        %2046 = vmatpush1.bf16.xpose.msra.mxu0 %v2037
        %2047 = vmatprep.subr.bf16.mxu0 0
        %2048 = vmatpush1.bf16.xpose.msra.mxu0 %v2038
        %2049 = vmatprep.subr.bf16.mxu0 0
        %2050 = vmatpush1.bf16.xpose.msra.mxu0 %v2039
        %2051 = vmatprep.subr.bf16.mxu0 0
        %2052 = vmatpush1.bf16.xpose.msra.mxu0 %v2040
        %2053 = vmatprep.subr.bf16.mxu0 0
        %2054 = vmatpush1.bf16.xpose.msra.mxu0 %v2041
        %2055 = vmatprep.subr.bf16.mxu0 0
        %2056 = vmatpush1.bf16.xpose.msra.mxu0 %v2042
        %2057 = vmatprep.subr.bf16.mxu0 0
        %2058 = vmatpush1.bf16.xpose.msra.mxu0 %v2043
        %2059 = vmatprep.subr.bf16.mxu0 0
        %2060 = vmatpush1.bf16.xpose.msra.mxu0 %v2044
        %2061 = vmatprep.subr.bf16.mxu0 0
        %2062 = vmatpush1.bf16.xpose.msra.mxu0 0
        %2063 = vmatprep.subr.bf16.mxu0 0
        %2064 = vmatpush1.bf16.xpose.msra.mxu0 0
        %2065 = vmatprep.subr.bf16.mxu0 0
        %2066 = vmatpush1.bf16.xpose.msra.mxu0 0
        %2067 = vmatprep.subr.bf16.mxu0 0
        %2068 = vmatpush1.bf16.xpose.msra.mxu0 0
        %2069 = vmatprep.subr.bf16.mxu0 0
        %2070 = vmatpush1.bf16.xpose.msra.mxu0 0
        %2071 = vmatprep.subr.bf16.mxu0 0
        %2072 = vmatpush1.bf16.xpose.msra.mxu0 0
        %2073 = vmatprep.subr.bf16.mxu0 0
        %2074 = vmatpush1.bf16.xpose.msra.mxu0 0
        %2075 = vmatprep.subr.bf16.mxu0 0
        %2076 = vmatpush1.bf16.xpose.msra.mxu0 0
        %2077 = vmatprep.mubr.bf16.mxu0 0
        %2078 = vmatmul.mubr.bf16.gmra.mrb[0].mxu0 %v2033
        %v2079 = vpop.f32.mrb[0].mxu0
        %v2080 = vadd.f32 %v1543, %v2079
        %v2081 = vpop.f32.mrb[0].mxu0
        %v2082 = vpop.f32.mrb[0].mxu0
        %v2083 = vadd.f32 %v1544, %v2082
        %v2084 = vpop.f32.mrb[0].mxu0
        %2085 = vmatprep.mubr.bf16.mxu0 0
        %2086 = vmatmul.mubr.bf16.gmra.mrb[0].mxu0 %v2034
        %v2087 = vpop.f32.mrb[0].mxu0
        %v2088 = vadd.f32 %v1545, %v2087
        %v2089 = vpop.f32.mrb[0].mxu0
        %v2090 = vpop.f32.mrb[0].mxu0
        %v2091 = vadd.f32 %v1546, %v2090
        %v2092 = vpop.f32.mrb[0].mxu0
        %2093 = vmatprep.mubr.bf16.mxu0 0
        %2094 = vmatmul.mubr.bf16.gmra.mrb[0].mxu0 %v2035
        %v2095 = vpop.f32.mrb[0].mxu0
        %v2096 = vadd.f32 %v1547, %v2095
        %v2097 = vpop.f32.mrb[0].mxu0
        %v2098 = vpop.f32.mrb[0].mxu0
        %v2099 = vadd.f32 %v1548, %v2098
        %v2100 = vpop.f32.mrb[0].mxu0
        %2101 = vmatprep.mubr.bf16.mxu0 0
        %2102 = vmatmul.mubr.bf16.gmra.mrb[0].mxu0 %v2036
        %v2103 = vpop.f32.mrb[0].mxu0
        %v2104 = vadd.f32 %v1549, %v2103
        %v2105 = vpop.f32.mrb[0].mxu0
        %v2106 = vpop.f32.mrb[0].mxu0
        %v2107 = vadd.f32 %v1550, %v2106
        %v2108 = vpop.f32.mrb[0].mxu0
        %2109 = vdwg.mxu0
        %2110 = vmax.xlane.f32.xlu0 %v2080
        %v2111 = vpop.xlane.xlu0 %2110
        %2112 = vmax.xlane.f32.xlu0 %v2083
        %v2113 = vpop.xlane.xlu0 %2112
        %2114 = vmax.xlane.f32.xlu0 %v2088
        %v2115 = vpop.xlane.xlu0 %2114
        %2116 = vmax.xlane.f32.xlu0 %v2091
        %v2117 = vpop.xlane.xlu0 %2116
        %2118 = vmax.xlane.f32.xlu0 %v2096
        %v2119 = vpop.xlane.xlu0 %2118
        %2120 = vmax.xlane.f32.xlu0 %v2099
        %v2121 = vpop.xlane.xlu0 %2120
        %2122 = vmax.xlane.f32.xlu0 %v2104
        %v2123 = vpop.xlane.xlu0 %2122
        %2124 = vmax.xlane.f32.xlu0 %v2107
        %v2125 = vpop.xlane.xlu0 %2124
        %v2126 = vsub.f32 %v2080, %v2111
        %v2127 = vsub.f32 %v2083, %v2113
        %v2128 = vsub.f32 %v2088, %v2115
        %v2129 = vsub.f32 %v2091, %v2117
        %v2130 = vsub.f32 %v2096, %v2119
        %v2131 = vsub.f32 %v2099, %v2121
        %v2132 = vsub.f32 %v2104, %v2123
        %v2133 = vsub.f32 %v2107, %v2125
        %v2134 = vmul.f32 %v2126, 1.442695
        %v2135 = vpow.pop %v2134
        %v2136 = vmul.f32 %v2127, 1.442695
        %v2137 = vpow.pop %v2136
        %v2138 = vmul.f32 %v2128, 1.442695
        %v2139 = vpow.pop %v2138
        %v2140 = vmul.f32 %v2129, 1.442695
        %v2141 = vpow.pop %v2140
        %v2142 = vmul.f32 %v2130, 1.442695
        %v2143 = vpow.pop %v2142
        %v2144 = vmul.f32 %v2131, 1.442695
        %v2145 = vpow.pop %v2144
        %v2146 = vmul.f32 %v2132, 1.442695
        %v2147 = vpow.pop %v2146
        %v2148 = vmul.f32 %v2133, 1.442695
        %v2149 = vpow.pop %v2148
        %2150 = vadd.xlane.f32.xlu0 %v2135
        %v2151 = vpop.xlane.xlu0 %2150
        %2152 = vadd.xlane.f32.xlu0 %v2137
        %v2153 = vpop.xlane.xlu0 %2152
        %2154 = vadd.xlane.f32.xlu0 %v2139
        %v2155 = vpop.xlane.xlu0 %2154
        %2156 = vadd.xlane.f32.xlu0 %v2141
        %v2157 = vpop.xlane.xlu0 %2156
        %2158 = vadd.xlane.f32.xlu0 %v2143
        %v2159 = vpop.xlane.xlu0 %2158
        %2160 = vadd.xlane.f32.xlu0 %v2145
        %v2161 = vpop.xlane.xlu0 %2160
        %2162 = vadd.xlane.f32.xlu0 %v2147
        %v2163 = vpop.xlane.xlu0 %2162
        %2164 = vadd.xlane.f32.xlu0 %v2149
        %v2165 = vpop.xlane.xlu0 %2164
        %v2166 = vmax.f32 %v2151, 1e-30
        %v2167 = vmax.f32 %v2153, 1e-30
        %v2168 = vmax.f32 %v2155, 1e-30
        %v2169 = vmax.f32 %v2157, 1e-30
        %v2170 = vmax.f32 %v2159, 1e-30
        %v2171 = vmax.f32 %v2161, 1e-30
        %v2172 = vmax.f32 %v2163, 1e-30
        %v2173 = vmax.f32 %v2165, 1e-30
        %v2174 = vpack.c.bf16 %v2137, %v2135
        %v2175 = vpack.c.bf16 %v2141, %v2139
        %v2176 = vpack.c.bf16 %v2145, %v2143
        %v2177 = vpack.c.bf16 %v2149, %v2147
        %v2178 = vpack.c.bf16 %v1421, %v1417
        %v2179 = vpack.c.bf16 %v1431, %v1427
        %v2180 = vpack.c.bf16 %v1441, %v1437
        %v2181 = vpack.c.bf16 %v1451, %v1447
        %v2182 = vpack.c.bf16 %v1461, %v1457
        %v2183 = vpack.c.bf16 %v1471, %v1467
        %v2184 = vpack.c.bf16 %v1481, %v1477
        %v2185 = vpack.c.bf16 %v1491, %v1487
        %2186 = vmatprep.subr.bf16.mxu0 0
        %2187 = vmatpush1.bf16.msra.mxu0 %v2178
        %2188 = vmatprep.subr.bf16.mxu0 0
        %2189 = vmatpush1.bf16.msra.mxu0 %v2179
        %2190 = vmatprep.subr.bf16.mxu0 0
        %2191 = vmatpush1.bf16.msra.mxu0 %v2180
        %2192 = vmatprep.subr.bf16.mxu0 0
        %2193 = vmatpush1.bf16.msra.mxu0 %v2181
        %2194 = vmatprep.subr.bf16.mxu0 0
        %2195 = vmatpush1.bf16.msra.mxu0 %v2182
        %2196 = vmatprep.subr.bf16.mxu0 0
        %2197 = vmatpush1.bf16.msra.mxu0 %v2183
        %2198 = vmatprep.subr.bf16.mxu0 0
        %2199 = vmatpush1.bf16.msra.mxu0 %v2184
        %2200 = vmatprep.subr.bf16.mxu0 0
        %2201 = vmatpush1.bf16.msra.mxu0 %v2185
        %2202 = vmatprep.subr.bf16.mxu0 0
        %2203 = vmatpush1.bf16.msra.mxu0 0
        %2204 = vmatprep.subr.bf16.mxu0 0
        %2205 = vmatpush1.bf16.msra.mxu0 0
        %2206 = vmatprep.subr.bf16.mxu0 0
        %2207 = vmatpush1.bf16.msra.mxu0 0
        %2208 = vmatprep.subr.bf16.mxu0 0
        %2209 = vmatpush1.bf16.msra.mxu0 0
        %2210 = vmatprep.subr.bf16.mxu0 0
        %2211 = vmatpush1.bf16.msra.mxu0 0
        %2212 = vmatprep.subr.bf16.mxu0 0
        %2213 = vmatpush1.bf16.msra.mxu0 0
        %2214 = vmatprep.subr.bf16.mxu0 0
        %2215 = vmatpush1.bf16.msra.mxu0 0
        %2216 = vmatprep.subr.bf16.mxu0 0
        %2217 = vmatpush1.bf16.msra.mxu0 0
        %2218 = vmatprep.mubr.bf16.mxu0 0
        %2219 = vmatmul.mubr.bf16.gmra.mrb[0].mxu0 %v2174
        %v2220 = vpop.f32.mrb[0].mxu0
        %v2221 = vadd.f32 0.0, %v2220
        %v2222 = vpop.f32.mrb[0].mxu0
        %v2223 = vpop.f32.mrb[0].mxu0
        %v2224 = vadd.f32 0.0, %v2223
        %v2225 = vpop.f32.mrb[0].mxu0
        %2226 = vmatprep.mubr.bf16.mxu0 0
        %2227 = vmatmul.mubr.bf16.gmra.mrb[0].mxu0 %v2175
        %v2228 = vpop.f32.mrb[0].mxu0
        %v2229 = vadd.f32 0.0, %v2228
        %v2230 = vpop.f32.mrb[0].mxu0
        %v2231 = vpop.f32.mrb[0].mxu0
        %v2232 = vadd.f32 0.0, %v2231
        %v2233 = vpop.f32.mrb[0].mxu0
        %2234 = vmatprep.mubr.bf16.mxu0 0
        %2235 = vmatmul.mubr.bf16.gmra.mrb[0].mxu0 %v2176
        %v2236 = vpop.f32.mrb[0].mxu0
        %v2237 = vadd.f32 0.0, %v2236
        %v2238 = vpop.f32.mrb[0].mxu0
        %v2239 = vpop.f32.mrb[0].mxu0
        %v2240 = vadd.f32 0.0, %v2239
        %v2241 = vpop.f32.mrb[0].mxu0
        %2242 = vmatprep.mubr.bf16.mxu0 0
        %2243 = vmatmul.mubr.bf16.gmra.mrb[0].mxu0 %v2177
        %v2244 = vpop.f32.mrb[0].mxu0
        %v2245 = vadd.f32 0.0, %v2244
        %v2246 = vpop.f32.mrb[0].mxu0
        %v2247 = vpop.f32.mrb[0].mxu0
        %v2248 = vadd.f32 0.0, %v2247
        %v2249 = vpop.f32.mrb[0].mxu0
        %2250 = vdwg.mxu0
        %v2251 = vrcp.pop %v2166
        %v2252 = vrcp.pop %v2167
        %v2253 = vrcp.pop %v2168
        %v2254 = vrcp.pop %v2169
        %v2255 = vrcp.pop %v2170
        %v2256 = vrcp.pop %v2171
        %v2257 = vrcp.pop %v2172
        %v2258 = vrcp.pop %v2173
        %v2259 = vmul.f32 %v2221, %v2251
        %v2260 = vmul.f32 %v2224, %v2252
        %v2261 = vmul.f32 %v2229, %v2253
        %v2262 = vmul.f32 %v2232, %v2254
        %v2263 = vmul.f32 %v2237, %v2255
        %v2264 = vmul.f32 %v2240, %v2256
        %v2265 = vmul.f32 %v2245, %v2257
        %v2266 = vmul.f32 %v2248, %v2258
        %2267 = vst [vmem:[#allocation2 + $0x8] sm:$0xff] %v2259
        %2268 = vst [vmem:[#allocation2 + $0x18] sm:$0xff] %v2260
        %2269 = vst [vmem:[#allocation2 + $0x28] sm:$0xff] %v2261
        %2270 = vst [vmem:[#allocation2 + $0x38] sm:$0xff] %v2262
        %2271 = vst [vmem:[#allocation2 + $0x48] sm:$0xff] %v2263
        %2272 = vst [vmem:[#allocation2 + $0x58] sm:$0xff] %v2264
        %2273 = vst [vmem:[#allocation2 + $0x68] sm:$0xff] %v2265
        %2274 = vst [vmem:[#allocation2 + $0x78] sm:$0xff] %v2266
        %v2275 = vld [vmem:[#allocation2] sm:$0xff]
        %v2276 = vld [vmem:[#allocation2 + $0x8] sm:$0xff]
        %v2277 = vld [vmem:[#allocation2 + $0x10] sm:$0xff]
        %v2278 = vld [vmem:[#allocation2 + $0x18] sm:$0xff]
        %v2279 = vld [vmem:[#allocation2 + $0x20] sm:$0xff]
        %v2280 = vld [vmem:[#allocation2 + $0x28] sm:$0xff]
        %v2281 = vld [vmem:[#allocation2 + $0x30] sm:$0xff]
        %v2282 = vld [vmem:[#allocation2 + $0x38] sm:$0xff]
        %v2283 = vld [vmem:[#allocation2 + $0x40] sm:$0xff]
        %v2284 = vld [vmem:[#allocation2 + $0x48] sm:$0xff]
        %v2285 = vld [vmem:[#allocation2 + $0x50] sm:$0xff]
        %v2286 = vld [vmem:[#allocation2 + $0x58] sm:$0xff]
        %v2287 = vld [vmem:[#allocation2 + $0x60] sm:$0xff]
        %v2288 = vld [vmem:[#allocation2 + $0x68] sm:$0xff]
        %v2289 = vld [vmem:[#allocation2 + $0x70] sm:$0xff]
        %v2290 = vld [vmem:[#allocation2 + $0x78] sm:$0xff]
        %v2291 = vpack.c.bf16 %v2277, %v2275
        %v2292 = vpack.c.bf16 %v2278, %v2276
        %v2293 = vpack.c.bf16 %v2281, %v2279
        %v2294 = vpack.c.bf16 %v2282, %v2280
        %v2295 = vpack.c.bf16 %v2285, %v2283
        %v2296 = vpack.c.bf16 %v2286, %v2284
        %v2297 = vpack.c.bf16 %v2289, %v2287
        %v2298 = vpack.c.bf16 %v2290, %v2288
        %v2299 = vld [vmem:[#allocation15] sm:$0xff]
        %v2300 = vld [vmem:[#allocation15 + $0x8] sm:$0xff]
        %v2301 = vld [vmem:[#allocation15 + $0x10] sm:$0xff]
        %v2302 = vld [vmem:[#allocation15 + $0x18] sm:$0xff]
        %v2303 = vld [vmem:[#allocation15 + $0x20] sm:$0xff]
        %v2304 = vld [vmem:[#allocation15 + $0x28] sm:$0xff]
        %v2305 = vld [vmem:[#allocation15 + $0x30] sm:$0xff]
        %v2306 = vld [vmem:[#allocation15 + $0x38] sm:$0xff]
        %v2307 = vld [vmem:[#allocation15 + $0x40] sm:$0xff]
        %v2308 = vld [vmem:[#allocation15 + $0x48] sm:$0xff]
        %v2309 = vld [vmem:[#allocation15 + $0x50] sm:$0xff]
        %v2310 = vld [vmem:[#allocation15 + $0x58] sm:$0xff]
        %v2311 = vld [vmem:[#allocation15 + $0x60] sm:$0xff]
        %v2312 = vld [vmem:[#allocation15 + $0x68] sm:$0xff]
        %v2313 = vld [vmem:[#allocation15 + $0x70] sm:$0xff]
        %v2314 = vld [vmem:[#allocation15 + $0x78] sm:$0xff]
        %v2315 = vld [vmem:[#allocation15 + $0x80] sm:$0xff]
        %v2316 = vld [vmem:[#allocation15 + $0x88] sm:$0xff]
        %v2317 = vld [vmem:[#allocation15 + $0x90] sm:$0xff]
        %v2318 = vld [vmem:[#allocation15 + $0x98] sm:$0xff]
        %v2319 = vld [vmem:[#allocation15 + $0xa0] sm:$0xff]
        %v2320 = vld [vmem:[#allocation15 + $0xa8] sm:$0xff]
        %v2321 = vld [vmem:[#allocation15 + $0xb0] sm:$0xff]
        %v2322 = vld [vmem:[#allocation15 + $0xb8] sm:$0xff]
        %v2323 = vld [vmem:[#allocation15 + $0xc0] sm:$0xff]
        %v2324 = vld [vmem:[#allocation15 + $0xc8] sm:$0xff]
        %v2325 = vld [vmem:[#allocation15 + $0xd0] sm:$0xff]
        %v2326 = vld [vmem:[#allocation15 + $0xd8] sm:$0xff]
        %v2327 = vld [vmem:[#allocation15 + $0xe0] sm:$0xff]
        %v2328 = vld [vmem:[#allocation15 + $0xe8] sm:$0xff]
        %v2329 = vld [vmem:[#allocation15 + $0xf0] sm:$0xff]
        %v2330 = vld [vmem:[#allocation15 + $0xf8] sm:$0xff]
        %v2363 = vunpack.c.l.b16 %v2299
        %v2364 = vunpack.c.h.b16 %v2299
        %v2365 = vunpack.c.l.b16 %v2300
        %v2366 = vunpack.c.h.b16 %v2300
        %v2367 = vunpack.c.l.b16 %v2301
        %v2368 = vunpack.c.h.b16 %v2301
        %v2369 = vunpack.c.l.b16 %v2302
        %v2370 = vunpack.c.h.b16 %v2302
        %v2371 = vunpack.c.l.b16 %v2303
        %v2372 = vunpack.c.h.b16 %v2303
        %v2373 = vunpack.c.l.b16 %v2304
        %v2374 = vunpack.c.h.b16 %v2304
        %v2375 = vunpack.c.l.b16 %v2305
        %v2376 = vunpack.c.h.b16 %v2305
        %v2377 = vunpack.c.l.b16 %v2306
        %v2378 = vunpack.c.h.b16 %v2306
        %v2379 = vunpack.c.l.b16 %v2307
        %v2380 = vunpack.c.h.b16 %v2307
        %v2381 = vunpack.c.l.b16 %v2308
        %v2382 = vunpack.c.h.b16 %v2308
        %v2383 = vunpack.c.l.b16 %v2309
        %v2384 = vunpack.c.h.b16 %v2309
        %v2385 = vunpack.c.l.b16 %v2310
        %v2386 = vunpack.c.h.b16 %v2310
        %v2387 = vunpack.c.l.b16 %v2311
        %v2388 = vunpack.c.h.b16 %v2311
        %v2389 = vunpack.c.l.b16 %v2312
        %v2390 = vunpack.c.h.b16 %v2312
        %v2391 = vunpack.c.l.b16 %v2313
        %v2392 = vunpack.c.h.b16 %v2313
        %v2393 = vunpack.c.l.b16 %v2314
        %v2394 = vunpack.c.h.b16 %v2314
        %v2395 = vunpack.c.l.b16 %v2315
        %v2396 = vunpack.c.h.b16 %v2315
        %v2397 = vunpack.c.l.b16 %v2316
        %v2398 = vunpack.c.h.b16 %v2316
        %v2399 = vunpack.c.l.b16 %v2317
        %v2400 = vunpack.c.h.b16 %v2317
        %v2401 = vunpack.c.l.b16 %v2318
        %v2402 = vunpack.c.h.b16 %v2318
        %v2403 = vunpack.c.l.b16 %v2319
        %v2404 = vunpack.c.h.b16 %v2319
        %v2405 = vunpack.c.l.b16 %v2320
        %v2406 = vunpack.c.h.b16 %v2320
        %v2407 = vunpack.c.l.b16 %v2321
        %v2408 = vunpack.c.h.b16 %v2321
        %v2409 = vunpack.c.l.b16 %v2322
        %v2410 = vunpack.c.h.b16 %v2322
        %v2411 = vunpack.c.l.b16 %v2323
        %v2412 = vunpack.c.h.b16 %v2323
        %v2413 = vunpack.c.l.b16 %v2324
        %v2414 = vunpack.c.h.b16 %v2324
        %v2415 = vunpack.c.l.b16 %v2325
        %v2416 = vunpack.c.h.b16 %v2325
        %v2417 = vunpack.c.l.b16 %v2326
        %v2418 = vunpack.c.h.b16 %v2326
        %v2419 = vunpack.c.l.b16 %v2327
        %v2420 = vunpack.c.h.b16 %v2327
        %v2421 = vunpack.c.l.b16 %v2328
        %v2422 = vunpack.c.h.b16 %v2328
        %v2423 = vunpack.c.l.b16 %v2329
        %v2424 = vunpack.c.h.b16 %v2329
        %v2425 = vunpack.c.l.b16 %v2330
        %v2426 = vunpack.c.h.b16 %v2330
        %v2427 = vpack.c.b16 %v2365, %v2363
        %v2428 = vpack.c.b16 %v2366, %v2364
        %v2429 = vpack.c.b16 %v2369, %v2367
        %v2430 = vpack.c.b16 %v2370, %v2368
        %v2431 = vpack.c.b16 %v2373, %v2371
        %v2432 = vpack.c.b16 %v2374, %v2372
        %v2433 = vpack.c.b16 %v2377, %v2375
        %v2434 = vpack.c.b16 %v2378, %v2376
        %v2435 = vpack.c.b16 %v2381, %v2379
        %v2436 = vpack.c.b16 %v2382, %v2380
        %v2437 = vpack.c.b16 %v2385, %v2383
        %v2438 = vpack.c.b16 %v2386, %v2384
        %v2439 = vpack.c.b16 %v2389, %v2387
        %v2440 = vpack.c.b16 %v2390, %v2388
        %v2441 = vpack.c.b16 %v2393, %v2391
        %v2442 = vpack.c.b16 %v2394, %v2392
        %v2443 = vpack.c.b16 %v2397, %v2395
        %v2444 = vpack.c.b16 %v2398, %v2396
        %v2445 = vpack.c.b16 %v2401, %v2399
        %v2446 = vpack.c.b16 %v2402, %v2400
        %v2447 = vpack.c.b16 %v2405, %v2403
        %v2448 = vpack.c.b16 %v2406, %v2404
        %v2449 = vpack.c.b16 %v2409, %v2407
        %v2450 = vpack.c.b16 %v2410, %v2408
        %v2451 = vpack.c.b16 %v2413, %v2411
        %v2452 = vpack.c.b16 %v2414, %v2412
        %v2453 = vpack.c.b16 %v2417, %v2415
        %v2454 = vpack.c.b16 %v2418, %v2416
        %v2455 = vpack.c.b16 %v2421, %v2419
        %v2456 = vpack.c.b16 %v2422, %v2420
        %v2457 = vpack.c.b16 %v2425, %v2423
        %v2458 = vpack.c.b16 %v2426, %v2424
        %2491 = vmatprep.subr.bf16.mxu0 %v2428
        %2492 = vmatpush1.bf16.msra.mxu0 %v2427
        %2493 = vmatprep.subr.bf16.mxu0 %v2430
        %2494 = vmatpush1.bf16.msra.mxu0 %v2429
        %2495 = vmatprep.subr.bf16.mxu0 %v2432
        %2496 = vmatpush1.bf16.msra.mxu0 %v2431
        %2497 = vmatprep.subr.bf16.mxu0 %v2434
        %2498 = vmatpush1.bf16.msra.mxu0 %v2433
        %2499 = vmatprep.subr.bf16.mxu0 %v2436
        %2500 = vmatpush1.bf16.msra.mxu0 %v2435
        %2501 = vmatprep.subr.bf16.mxu0 %v2438
        %2502 = vmatpush1.bf16.msra.mxu0 %v2437
        %2503 = vmatprep.subr.bf16.mxu0 %v2440
        %2504 = vmatpush1.bf16.msra.mxu0 %v2439
        %2505 = vmatprep.subr.bf16.mxu0 %v2442
        %2506 = vmatpush1.bf16.msra.mxu0 %v2441
        %2507 = vmatprep.subr.bf16.mxu0 %v2444
        %2508 = vmatpush1.bf16.msra.mxu0 %v2443
        %2509 = vmatprep.subr.bf16.mxu0 %v2446
        %2510 = vmatpush1.bf16.msra.mxu0 %v2445
        %2511 = vmatprep.subr.bf16.mxu0 %v2448
        %2512 = vmatpush1.bf16.msra.mxu0 %v2447
        %2513 = vmatprep.subr.bf16.mxu0 %v2450
        %2514 = vmatpush1.bf16.msra.mxu0 %v2449
        %2515 = vmatprep.subr.bf16.mxu0 %v2452
        %2516 = vmatpush1.bf16.msra.mxu0 %v2451
        %2517 = vmatprep.subr.bf16.mxu0 %v2454
        %2518 = vmatpush1.bf16.msra.mxu0 %v2453
        %2519 = vmatprep.subr.bf16.mxu0 %v2456
        %2520 = vmatpush1.bf16.msra.mxu0 %v2455
        %2521 = vmatprep.subr.bf16.mxu0 %v2458
        %2522 = vmatpush1.bf16.msra.mxu0 %v2457
        %2523 = vmatprep.mubr.bf16.mxu0 %v2292
        %2524 = vmatmul.mubr.bf16.gmra.mrb[0].mxu0 %v2291
        %v2525 = vpop.f32.mrb[0].mxu0
        %v2526 = vadd.f32 0.0, %v2525
        %v2527 = vpop.f32.mrb[0].mxu0
        %v2528 = vadd.f32 0.0, %v2527
        %v2529 = vpop.f32.mrb[0].mxu0
        %v2530 = vadd.f32 0.0, %v2529
        %v2531 = vpop.f32.mrb[0].mxu0
        %v2532 = vadd.f32 0.0, %v2531
        %2533 = vmatprep.mubr.bf16.mxu0 %v2294
        %2534 = vmatmul.mubr.bf16.gmra.mrb[0].mxu0 %v2293
        %v2535 = vpop.f32.mrb[0].mxu0
        %v2536 = vadd.f32 0.0, %v2535
        %v2537 = vpop.f32.mrb[0].mxu0
        %v2538 = vadd.f32 0.0, %v2537
        %v2539 = vpop.f32.mrb[0].mxu0
        %v2540 = vadd.f32 0.0, %v2539
        %v2541 = vpop.f32.mrb[0].mxu0
        %v2542 = vadd.f32 0.0, %v2541
        %2543 = vmatprep.mubr.bf16.mxu0 %v2296
        %2544 = vmatmul.mubr.bf16.gmra.mrb[0].mxu0 %v2295
        %v2545 = vpop.f32.mrb[0].mxu0
        %v2546 = vadd.f32 0.0, %v2545
        %v2547 = vpop.f32.mrb[0].mxu0
        %v2548 = vadd.f32 0.0, %v2547
        %v2549 = vpop.f32.mrb[0].mxu0
        %v2550 = vadd.f32 0.0, %v2549
        %v2551 = vpop.f32.mrb[0].mxu0
        %v2552 = vadd.f32 0.0, %v2551
        %2553 = vmatprep.mubr.bf16.mxu0 %v2298
        %2554 = vmatmul.mubr.bf16.gmra.mrb[0].mxu0 %v2297
        %v2555 = vpop.f32.mrb[0].mxu0
        %v2556 = vadd.f32 0.0, %v2555
        %v2557 = vpop.f32.mrb[0].mxu0
        %v2558 = vadd.f32 0.0, %v2557
        %v2559 = vpop.f32.mrb[0].mxu0
        %v2560 = vadd.f32 0.0, %v2559
        %v2561 = vpop.f32.mrb[0].mxu0
        %v2562 = vadd.f32 0.0, %v2561
        %2563 = vdwg.mxu0
        %2564 = vst [vmem:[%s464] sm:$0xff] %v2526
        %2565 = vst [vmem:[%s464 + $0x8] sm:$0xff] %v2528
        %2566 = vst [vmem:[%s464 + $0x10] sm:$0xff] %v2530
        %2567 = vst [vmem:[%s464 + $0x18] sm:$0xff] %v2532
        %2568 = vst [vmem:[%s464 + $0x20] sm:$0xff] %v2536
        %2569 = vst [vmem:[%s464 + $0x28] sm:$0xff] %v2538
        %2570 = vst [vmem:[%s464 + $0x30] sm:$0xff] %v2540
        %2571 = vst [vmem:[%s464 + $0x38] sm:$0xff] %v2542
        %2572 = vst [vmem:[%s464 + $0x40] sm:$0xff] %v2546
        %2573 = vst [vmem:[%s464 + $0x48] sm:$0xff] %v2548
        %2574 = vst [vmem:[%s464 + $0x50] sm:$0xff] %v2550
        %2575 = vst [vmem:[%s464 + $0x58] sm:$0xff] %v2552
        %2576 = vst [vmem:[%s464 + $0x60] sm:$0xff] %v2556
        %2577 = vst [vmem:[%s464 + $0x68] sm:$0xff] %v2558
        %2578 = vst [vmem:[%s464 + $0x70] sm:$0xff] %v2560
        %2579 = vst [vmem:[%s464 + $0x78] sm:$0xff] %v2562
        %s2580 = sand.u32 %s231, 1
        %s2581 = scalar_lea.sflag [#allocation5], %s2580
        %s2582 = sand.u32 %s231, 1
        %s2583 = smul.addr %s2582, 128
        %s2584 = scalar_lea.vmem [#allocation17], %s2583
        // Predicated region
        $region85: #{tpu_custom_call.1} parent=51 // pred_check
          %p2585 = pneg %p241
        $region86: #{tpu_custom_call.1} parent=51 // pred_check_branch
          %2587 = sbr.rel (%p2585) target = $region88
        $region87: #{tpu_custom_call.1} parent=51 // pred_region
          %s2588 = smul.u32 8, %s36
          %s2590 = ssub.s32 2048, 2048
          %2591 = vsyncadd %s2581, %s2590
          %s2592 = smul.addr %s2588, 2
          %s2593 = smul.addr %s35, 32
          %s2594 = sadd.s32 %s2592, %s2593
          %s2595 = smul.addr %s2594, 128
          %s2596 = scalar_lea.hbm %s8, %s2595
          %s2597 = sshll.u32 %s2584, 4
          %s2598 = int_to_ptr.vmem [resolvable:$true] %s2597
          %2603 = dma.vmem_to_hbm [thread:$0]  %s2598, 2048, %s2596, %s2581, 256, 256, 16
        $region88: #{tpu_custom_call.1} parent=51 // pred_fallthru
          _
      $region52: #{tpu_custom_call.1} parent=5 // pred_fallthru
        _
      %p2604 = scmp.le.s32.totalorder 2, %s26
      // Predicated region
      $region89: #{tpu_custom_call.1} parent=5 // pred_check
        %p2605 = pneg %p2604
      $region90: #{tpu_custom_call.1} parent=5 // pred_check_branch
        %2607 = sbr.rel (%p2605) target = $region92
      $region91: #{tpu_custom_call.1} parent=5 // pred_region
        %s2608 = ssub.s32 %s26, 2
        // Predicated region
        $region93: #{tpu_custom_call.1} parent=91 // pred_check
          %p2609 = pneg %p247
        $region94: #{tpu_custom_call.1} parent=91 // pred_check_branch
          %2611 = sbr.rel (%p2609) target = $region96
        $region95: #{tpu_custom_call.1} parent=91 // pred_region
          %s2612 = sand.u32 %s232, 1
          %s2613 = scalar_lea.sflag [#allocation5], %s2612
          %s2614 = sand.u32 %s232, 1
          %s2615 = smul.addr %s2614, 128
          %s2616 = scalar_lea.vmem [#allocation17], %s2615
          %2617 = dma.done %s2613, 2048
        $region96: #{tpu_custom_call.1} parent=91 // pred_fallthru
          _
      $region92: #{tpu_custom_call.1} parent=5 // pred_fallthru
        _
    $region6: #{tpu_custom_call.1} parent=1 // loop_footer
      %s30 = sadd.s32 1, %s26
    $region7: #{tpu_custom_call.1} parent=1 // loop_footer_branch
      %25 = sbr.rel target = $region3
    $region8: #{tpu_custom_call.1} parent=1 // loop_exit
      _
    %2618 = vsyncpa [#allocation4], 1
    %s2619 = scalar_lea.sflag [#allocation4], 1
    %2620 = vsyncpa %s2619, 1
    %2621 = vsyncpa [#allocation7], 1
    %2622 = vsyncpa [#allocation10], 1
    %s2623 = scalar_lea.sflag [#allocation10], 1
    %2624 = vsyncpa %s2623, 1
    %2625 = vsyncpa [#allocation13], 1
    %2626 = vsyncpa [#allocation16], 1
    %2627 = vsyncpa [#allocation5], 1
    %s2628 = scalar_lea.sflag [#allocation5], 1
    %2629 = vsyncpa %s2628, 1

</llo_original>
